<compile_context>
chip_gen: v6e
topology: v6e:2x2x1
jax: 0.10.0
libtpu: 0.0.40
codegen_flags: <defaults>
</compile_context>

<pallas_src>
import functools

import jax
import jax.numpy as jnp
from jax import lax
from jax.experimental import pallas as pl
from jax.experimental.pallas import tpu as pltpu


def ce_block_kernel(x_ref, s1_ref, t1_ref, wg_ref, s2_ref, t2_ref,
                    wh_ref, bh_ref, wl_ref, s3_ref, t3_ref, m_ref,
                    feat_ref, pred_ref, *, C, BG, W, n_partial=4):
    """One grid step = one group of BG batches, packed along sublanes.

    x_ref    : (BG*C, H*W)      packed activations (lane axis = H*W)
    s*/t*    : (BG*C, 1)        folded-BN scale/shift, tiled per batch in group
    wg_ref   : (BG*C, BG*C)     block-diagonal conv_gap 1x1 weight
    wh_ref   : (Kp, C)          context_head weight (rows >= 9 are zero)
    bh_ref   : (Kp, 1)          context_head bias
    wl_ref   : (9, BG*C, BG*C)  block-diagonal 3x3-conv weight per tap
    m_ref    : (9, BG*C, H*W)   f32 SAME-padding border masks per tap
    feat_ref : (BG*C, H*W)      output slab
    pred_ref : (1, Kp, BG)      context_head logits for this batch group
    """
    BGC, HW = x_ref.shape
    inv_hw = 1.0 / float(HW)

    xb = x_ref[...].astype(jnp.float32)                       # (BGC, HW)
    s1 = s1_ref[...]; t1 = t1_ref[...]
    s2 = s2_ref[...]; t2 = t2_ref[...]
    s3 = s3_ref[...]; t3 = t3_ref[...]
    wg = wg_ref[...].astype(jnp.float32)                      # (BGC, BGC)
    wh = wh_ref[...].astype(jnp.float32)                      # (Kp, C)
    bh = bh_ref[...].astype(jnp.float32)                      # (Kp, 1)
    wl = wl_ref[...].astype(jnp.float32)                      # (9, BGC, BGC)

    # ---- global average pool (per batch*channel row) + self.bn affine ------
    gap = jnp.sum(xb, axis=1, keepdims=True) * inv_hw         # (BGC, 1)
    g = gap * s1 + t1

    # ---- conv_gap: 1x1 conv + BN + ReLU (block-diag rank-1 sums, tiny) ------
    u = wg[:, 0:1] * g[0:1, :]
    for cin in range(1, BGC):
        u = u + wg[:, cin:cin + 1] * g[cin:cin + 1, :]
    v = jnp.maximum(u * s2 + t2, 0.0)                         # (BGC, 1)

    # ---- context_head: 1x1 conv + bias, one block store per group ----------
    cols = []
    for b in range(BG):
        p = bh
        for cin in range(C):
            r = b * C + cin
            p = p + wh[:, cin:cin + 1] * v[r:r + 1, :]
        cols.append(p)
    pred_ref[0, :, :] = jnp.concatenate(cols, axis=1).astype(pred_ref.dtype)

    # ---- feat = v + x (broadcast along the lane / spatial axis) ------------
    feat = xb + v                                             # (BGC, HW)

    # ---- conv_last: 3x3 SAME conv as rolled+masked rank-1 MACs (VPU path) --
    partials = [None] * n_partial
    idx = 0
    for dy in (-1, 0, 1):
        for dx in (-1, 0, 1):
            tap = (dy + 1) * 3 + (dx + 1)
            off = dy * W + dx
            shifted = feat if off == 0 else pltpu.roll(
                feat, shift=(-off) % HW, axis=1)
            if dy == 0 and dx == 0:
                tapped = shifted
            else:
                tapped = shifted * m_ref[tap]                 # pre-broadcast mask
            wt = wl[tap]                                      # (BGC, BGC)
            for cin in range(BGC):
                prod = wt[:, cin:cin + 1] * tapped[cin:cin + 1, :]
                k = idx % n_partial
                partials[k] = prod if partials[k] is None else partials[k] + prod
                idx += 1
    parts = [p for p in partials if p is not None]
    while len(parts) > 1:                                     # tree reduce
        parts = [parts[i] + parts[i + 1] if i + 1 < len(parts) else parts[i]
                 for i in range(0, len(parts), 2)]
    acc = parts[0]

    feat_ref[...] = jnp.maximum(acc * s3 + t3, 0.0).astype(feat_ref.dtype)


def _block_diag(w, n):
    """(O, I) -> (n*O, n*I): n copies of w on the diagonal."""
    O, I = w.shape
    out = jnp.zeros((n * O, n * I), w.dtype)
    for b in range(n):
        out = out.at[b * O:(b + 1) * O, b * I:(b + 1) * I].set(w)
    return out


def ce_block(x_nchw, params):
    """x_nchw: (B, C, H, W) float32. Returns (feat (B,C,H,W), pred (B,9))."""
    B, C, H, W = x_nchw.shape
    HW = H * W
    s1, t1, wg, s2, t2, wh, bh, wl, s3, t3 = params
    Kp = wh.shape[0]

    # Pack BG batches per grid step so the sublane axis (BG*C) fills 8 rows.
    BG = max(1, 8 // C) if C < 8 else 1
    while BG > 1 and B % BG != 0:
        BG -= 1
    BGC = BG * C
    G = B // BG
    assert BGC % 8 == 0 or G == 1, "pick B/C so packed blocks are tileable"

    # Free reshape: lane axis = H*W (dense), sublane axis = batch*channel.
    x_packed = x_nchw.reshape(B * C, HW)

    # Per-batch-group parameter prep (tiny, done once outside the kernel).
    tile = lambda a: jnp.tile(a, (BG, 1))                     # (C,1) -> (BGC,1)
    s1t, t1t = tile(s1), tile(t1)
    s2t, t2t = tile(s2), tile(t2)
    s3t, t3t = tile(s3), tile(t3)
    wg_big = _block_diag(wg, BG)                              # (BGC, BGC)
    wl_big = jnp.stack([_block_diag(wl[t], BG) for t in range(9)])

    # f32 multiplicative border masks for the 3x3 SAME conv, pre-broadcast to
    # slab shape so no broadcast is re-emitted inside the tap loop.
    sp = jnp.arange(HW, dtype=jnp.int32)
    hh, ww = sp // W, sp % W
    rows = []
    for dy in (-1, 0, 1):
        for dx in (-1, 0, 1):
            ok = (hh + dy >= 0) & (hh + dy < H) & (ww + dx >= 0) & (ww + dx < W)
            rows.append(ok.astype(jnp.float32))
    masks = jnp.broadcast_to(jnp.stack(rows)[:, None, :], (9, BGC, HW))

    const2 = lambda g: (0, 0)
    const3 = lambda g: (0, 0, 0)
    kernel = functools.partial(ce_block_kernel, C=C, BG=BG, W=W)

    feat_flat, pred_raw = pl.pallas_call(
        kernel,
        out_shape=(jax.ShapeDtypeStruct((B * C, HW), x_nchw.dtype),
                   jax.ShapeDtypeStruct((G, Kp, BG), x_nchw.dtype)),
        grid=(G,),
        in_specs=[
            pl.BlockSpec((BGC, HW), lambda g: (g, 0)),        # x (per group)
            pl.BlockSpec((BGC, 1), const2),                   # s1
            pl.BlockSpec((BGC, 1), const2),                   # t1
            pl.BlockSpec((BGC, BGC), const2),                 # wg_big
            pl.BlockSpec((BGC, 1), const2),                   # s2
            pl.BlockSpec((BGC, 1), const2),                   # t2
            pl.BlockSpec((Kp, C), const2),                    # wh
            pl.BlockSpec((Kp, 1), const2),                    # bh
            pl.BlockSpec((9, BGC, BGC), const3),              # wl_big
            pl.BlockSpec((BGC, 1), const2),                   # s3
            pl.BlockSpec((BGC, 1), const2),                   # t3
            pl.BlockSpec((9, BGC, HW), const3),               # masks
        ],
        out_specs=(
            pl.BlockSpec((BGC, HW), lambda g: (g, 0)),        # feat (per group)
            pl.BlockSpec((1, Kp, BG), lambda g: (g, 0, 0)),   # pred (per group)
        ),
        compiler_params=pltpu.CompilerParams(
            dimension_semantics=("parallel",),
            vmem_limit_bytes=32 * 1024 * 1024,
        ),
    )(x_packed, s1t, t1t, wg_big, s2t, t2t, wh, bh, wl_big, s3t, t3t, masks)

    feat = feat_flat.reshape(B, C, H, W)
    pred = pred_raw.transpose(0, 2, 1).reshape(B, Kp)[:, :9]
    return feat, pred


def make_params(key, C, dtype=jnp.float32, k_pad=16):
    """Deterministic synthetic parameters (BN folded to scale/shift)."""
    eps = 1e-5
    keys = jax.random.split(key, 8)

    def bn_affine(k):
        kg, kb, km, kv = jax.random.split(k, 4)
        gamma = 1.0 + 0.1 * jax.random.normal(kg, (C,), dtype)
        beta = 0.1 * jax.random.normal(kb, (C,), dtype)
        rmean = 0.1 * jax.random.normal(km, (C,), dtype)
        rvar = 1.0 + 0.1 * jax.random.uniform(kv, (C,), dtype)
        scale = gamma / jnp.sqrt(rvar + eps)
        shift = beta - rmean * scale
        return scale.reshape(C, 1), shift.reshape(C, 1)

    s1, t1 = bn_affine(keys[0])                      # self.bn
    s2, t2 = bn_affine(keys[1])                      # conv_gap.bn
    s3, t3 = bn_affine(keys[2])                      # conv_last.bn
    # conv_gap.conv: Conv2d(C, C, 1, bias=False) -> weight (Cout, Cin)
    wg = 0.3 * jax.random.normal(keys[3], (C, C), dtype)
    # context_head: Conv2d(C, 9, 1, bias=True), padded to k_pad output rows
    wh9 = 0.3 * jax.random.normal(keys[4], (9, C), dtype)
    bh9 = 0.1 * jax.random.normal(keys[5], (9,), dtype)
    wh = jnp.zeros((k_pad, C), dtype).at[:9].set(wh9)
    bh = jnp.zeros((k_pad, 1), dtype).at[:9, 0].set(bh9)
    # conv_last.conv: Conv2d(C, C, 3, pad=1, bias=False) -> (tap, Cout, Cin)
    wl = 0.1 * jax.random.normal(keys[6], (9, C, C), dtype)
    return (s1, t1, wg, s2, t2, wh, bh, wl, s3, t3)


def ce_block_ref(x_nchw, params):
    """Pure-JAX reference for validation (inference-mode BN)."""
    s1, t1, wg, s2, t2, wh, bh, wl, s3, t3 = params
    B, C, H, W = x_nchw.shape
    gap = jnp.mean(x_nchw, axis=(2, 3))                       # (B, C)
    g = gap * s1[:, 0] + t1[:, 0]
    u = jnp.einsum('bc,oc->bo', g, wg)
    v = jnp.maximum(u * s2[:, 0] + t2[:, 0], 0.0)
    pred = jnp.einsum('bc,oc->bo', v, wh[:9]) + bh[:9, 0]
    feat = x_nchw + v[:, :, None, None]
    w_oihw = wl.reshape(3, 3, C, C).transpose(2, 3, 0, 1)     # (Cout, Cin, kh, kw)
    out = lax.conv_general_dilated(feat, w_oihw, (1, 1), 'SAME',
                                   dimension_numbers=('NCHW', 'OIHW', 'NCHW'))
    out = jnp.maximum(out * s3.reshape(1, C, 1, 1) + t3.reshape(1, C, 1, 1), 0.0)
    return out, pred


if __name__ == "__main__":
    key = jax.random.PRNGKey(0)
    kx, kp = jax.random.split(key)

    B, C, H, W = 2, 4, 16, 16
    x_nchw = jax.random.normal(kx, (B, C, H, W), jnp.float32)
    params = make_params(kp, C)

    feat, pred = ce_block(x_nchw, params)
    jax.block_until_ready((feat, pred))

    ref_feat, ref_pred = ce_block_ref(x_nchw, params)
    assert feat.shape == (B, C, H, W) and pred.shape == (B, 9)
    assert jnp.allclose(feat, ref_feat, rtol=1e-3, atol=1e-3), \
        float(jnp.max(jnp.abs(feat - ref_feat)))
    assert jnp.allclose(pred, ref_pred, rtol=1e-3, atol=1e-3)

    print("KERNEL_OK")
</pallas_src>

<mosaic_0001>
module attributes {stable_mosaic.version = 11 : i64} {
  func.func @ce_block_kernel(%arg0: i32, %arg1: memref<8x256xf32, #tpu.memory_space<vmem>>, %arg2: memref<8x1xf32, #tpu.memory_space<vmem>>, %arg3: memref<8x1xf32, #tpu.memory_space<vmem>>, %arg4: memref<8x8xf32, #tpu.memory_space<vmem>>, %arg5: memref<8x1xf32, #tpu.memory_space<vmem>>, %arg6: memref<8x1xf32, #tpu.memory_space<vmem>>, %arg7: memref<16x4xf32, #tpu.memory_space<vmem>>, %arg8: memref<16x1xf32, #tpu.memory_space<vmem>>, %arg9: memref<9x8x8xf32, #tpu.memory_space<vmem>>, %arg10: memref<8x1xf32, #tpu.memory_space<vmem>>, %arg11: memref<8x1xf32, #tpu.memory_space<vmem>>, %arg12: memref<9x8x256xf32, #tpu.memory_space<vmem>>, %arg13: memref<8x256xf32, #tpu.memory_space<vmem>>, %arg14: memref<1x16x2xf32, #tpu.memory_space<vmem>>) attributes {dimension_semantics = [#tpu.dimension_semantics<parallel>], iteration_bounds = array<i64: 1>, scalar_prefetch = 0 : i64, scratch_operands = 0 : i64, tpu.core_type = #tpu.core_type<tc>, window_params = [{transform_indices = @transform_0, window_bounds = array<i64: 8, 256>}, {pipeline_mode = #tpu.pipeline_mode<synchronous>, transform_indices = @transform_1, window_bounds = array<i64: 8, 1>}, {pipeline_mode = #tpu.pipeline_mode<synchronous>, transform_indices = @transform_2, window_bounds = array<i64: 8, 1>}, {pipeline_mode = #tpu.pipeline_mode<synchronous>, transform_indices = @transform_3, window_bounds = array<i64: 8, 8>}, {pipeline_mode = #tpu.pipeline_mode<synchronous>, transform_indices = @transform_4, window_bounds = array<i64: 8, 1>}, {pipeline_mode = #tpu.pipeline_mode<synchronous>, transform_indices = @transform_5, window_bounds = array<i64: 8, 1>}, {pipeline_mode = #tpu.pipeline_mode<synchronous>, transform_indices = @transform_6, window_bounds = array<i64: 16, 4>}, {pipeline_mode = #tpu.pipeline_mode<synchronous>, transform_indices = @transform_7, window_bounds = array<i64: 16, 1>}, {pipeline_mode = #tpu.pipeline_mode<synchronous>, transform_indices = @transform_8, window_bounds = array<i64: 9, 8, 8>}, {pipeline_mode = #tpu.pipeline_mode<synchronous>, transform_indices = @transform_9, window_bounds = array<i64: 8, 1>}, {pipeline_mode = #tpu.pipeline_mode<synchronous>, transform_indices = @transform_10, window_bounds = array<i64: 8, 1>}, {pipeline_mode = #tpu.pipeline_mode<synchronous>, transform_indices = @transform_11, window_bounds = array<i64: 9, 8, 256>}, {transform_indices = @transform_12, window_bounds = array<i64: 8, 256>}, {transform_indices = @transform_13, window_bounds = array<i64: 1, 16, 2>}]} {
    %c0 = arith.constant 0 : index
    %c0_0 = arith.constant 0 : index
    %0 = vector.load %arg1[%c0, %c0_0] : memref<8x256xf32, #tpu.memory_space<vmem>>, vector<8x256xf32>
    %c0_1 = arith.constant 0 : index
    %c0_2 = arith.constant 0 : index
    %1 = vector.load %arg2[%c0_1, %c0_2] : memref<8x1xf32, #tpu.memory_space<vmem>>, vector<8x1xf32>
    %c0_3 = arith.constant 0 : index
    %c0_4 = arith.constant 0 : index
    %2 = vector.load %arg3[%c0_3, %c0_4] : memref<8x1xf32, #tpu.memory_space<vmem>>, vector<8x1xf32>
    %c0_5 = arith.constant 0 : index
    %c0_6 = arith.constant 0 : index
    %3 = vector.load %arg5[%c0_5, %c0_6] : memref<8x1xf32, #tpu.memory_space<vmem>>, vector<8x1xf32>
    %c0_7 = arith.constant 0 : index
    %c0_8 = arith.constant 0 : index
    %4 = vector.load %arg6[%c0_7, %c0_8] : memref<8x1xf32, #tpu.memory_space<vmem>>, vector<8x1xf32>
    %c0_9 = arith.constant 0 : index
    %c0_10 = arith.constant 0 : index
    %5 = vector.load %arg10[%c0_9, %c0_10] : memref<8x1xf32, #tpu.memory_space<vmem>>, vector<8x1xf32>
    %c0_11 = arith.constant 0 : index
    %c0_12 = arith.constant 0 : index
    %6 = vector.load %arg11[%c0_11, %c0_12] : memref<8x1xf32, #tpu.memory_space<vmem>>, vector<8x1xf32>
    %c0_13 = arith.constant 0 : index
    %c0_14 = arith.constant 0 : index
    %7 = vector.load %arg4[%c0_13, %c0_14] : memref<8x8xf32, #tpu.memory_space<vmem>>, vector<8x8xf32>
    %c0_15 = arith.constant 0 : index
    %c0_16 = arith.constant 0 : index
    %8 = vector.load %arg7[%c0_15, %c0_16] : memref<16x4xf32, #tpu.memory_space<vmem>>, vector<16x4xf32>
    %c0_17 = arith.constant 0 : index
    %c0_18 = arith.constant 0 : index
    %9 = vector.load %arg8[%c0_17, %c0_18] : memref<16x1xf32, #tpu.memory_space<vmem>>, vector<16x1xf32>
    %c0_19 = arith.constant 0 : index
    %c0_20 = arith.constant 0 : index
    %c0_21 = arith.constant 0 : index
    %10 = vector.load %arg9[%c0_19, %c0_20, %c0_21] : memref<9x8x8xf32, #tpu.memory_space<vmem>>, vector<9x8x8xf32>
    %cst = arith.constant dense<0.000000e+00> : vector<8xf32>
    %11 = vector.multi_reduction <add>, %0, %cst [1] : vector<8x256xf32> to vector<8xf32>
    %12 = vector.shape_cast %11 : vector<8xf32> to vector<8x1xf32>
    %cst_22 = arith.constant 3.906250e-03 : f32
    %13 = vector.broadcast %cst_22 : f32 to vector<8x1xf32>
    %14 = arith.mulf %12, %13 : vector<8x1xf32>
    %15 = arith.mulf %14, %1 : vector<8x1xf32>
    %16 = arith.addf %15, %2 : vector<8x1xf32>
    %17 = vector.extract_strided_slice %7 {offsets = [0, 0], sizes = [8, 1], strides = [1, 1]} : vector<8x8xf32> to vector<8x1xf32>
    %18 = vector.extract_strided_slice %16 {offsets = [0, 0], sizes = [1, 1], strides = [1, 1]} : vector<8x1xf32> to vector<1x1xf32>
    %19 = vector.broadcast %18 : vector<1x1xf32> to vector<8x1xf32>
    %20 = arith.mulf %17, %19 : vector<8x1xf32>
    %21 = vector.extract_strided_slice %7 {offsets = [0, 1], sizes = [8, 1], strides = [1, 1]} : vector<8x8xf32> to vector<8x1xf32>
    %22 = vector.extract_strided_slice %16 {offsets = [1, 0], sizes = [1, 1], strides = [1, 1]} : vector<8x1xf32> to vector<1x1xf32>
    %23 = vector.broadcast %22 : vector<1x1xf32> to vector<8x1xf32>
    %24 = arith.mulf %21, %23 : vector<8x1xf32>
    %25 = arith.addf %20, %24 : vector<8x1xf32>
    %26 = vector.extract_strided_slice %7 {offsets = [0, 2], sizes = [8, 1], strides = [1, 1]} : vector<8x8xf32> to vector<8x1xf32>
    %27 = vector.extract_strided_slice %16 {offsets = [2, 0], sizes = [1, 1], strides = [1, 1]} : vector<8x1xf32> to vector<1x1xf32>
    %28 = vector.broadcast %27 : vector<1x1xf32> to vector<8x1xf32>
    %29 = arith.mulf %26, %28 : vector<8x1xf32>
    %30 = arith.addf %25, %29 : vector<8x1xf32>
    %31 = vector.extract_strided_slice %7 {offsets = [0, 3], sizes = [8, 1], strides = [1, 1]} : vector<8x8xf32> to vector<8x1xf32>
    %32 = vector.extract_strided_slice %16 {offsets = [3, 0], sizes = [1, 1], strides = [1, 1]} : vector<8x1xf32> to vector<1x1xf32>
    %33 = vector.broadcast %32 : vector<1x1xf32> to vector<8x1xf32>
    %34 = arith.mulf %31, %33 : vector<8x1xf32>
    %35 = arith.addf %30, %34 : vector<8x1xf32>
    %36 = vector.extract_strided_slice %7 {offsets = [0, 4], sizes = [8, 1], strides = [1, 1]} : vector<8x8xf32> to vector<8x1xf32>
    %37 = vector.extract_strided_slice %16 {offsets = [4, 0], sizes = [1, 1], strides = [1, 1]} : vector<8x1xf32> to vector<1x1xf32>
    %38 = vector.broadcast %37 : vector<1x1xf32> to vector<8x1xf32>
    %39 = arith.mulf %36, %38 : vector<8x1xf32>
    %40 = arith.addf %35, %39 : vector<8x1xf32>
    %41 = vector.extract_strided_slice %7 {offsets = [0, 5], sizes = [8, 1], strides = [1, 1]} : vector<8x8xf32> to vector<8x1xf32>
    %42 = vector.extract_strided_slice %16 {offsets = [5, 0], sizes = [1, 1], strides = [1, 1]} : vector<8x1xf32> to vector<1x1xf32>
    %43 = vector.broadcast %42 : vector<1x1xf32> to vector<8x1xf32>
    %44 = arith.mulf %41, %43 : vector<8x1xf32>
    %45 = arith.addf %40, %44 : vector<8x1xf32>
    %46 = vector.extract_strided_slice %7 {offsets = [0, 6], sizes = [8, 1], strides = [1, 1]} : vector<8x8xf32> to vector<8x1xf32>
    %47 = vector.extract_strided_slice %16 {offsets = [6, 0], sizes = [1, 1], strides = [1, 1]} : vector<8x1xf32> to vector<1x1xf32>
    %48 = vector.broadcast %47 : vector<1x1xf32> to vector<8x1xf32>
    %49 = arith.mulf %46, %48 : vector<8x1xf32>
    %50 = arith.addf %45, %49 : vector<8x1xf32>
    %51 = vector.extract_strided_slice %7 {offsets = [0, 7], sizes = [8, 1], strides = [1, 1]} : vector<8x8xf32> to vector<8x1xf32>
    %52 = vector.extract_strided_slice %16 {offsets = [7, 0], sizes = [1, 1], strides = [1, 1]} : vector<8x1xf32> to vector<1x1xf32>
    %53 = vector.broadcast %52 : vector<1x1xf32> to vector<8x1xf32>
    %54 = arith.mulf %51, %53 : vector<8x1xf32>
    %55 = arith.addf %50, %54 : vector<8x1xf32>
    %56 = arith.mulf %55, %3 : vector<8x1xf32>
    %57 = arith.addf %56, %4 : vector<8x1xf32>
    %cst_23 = arith.constant 0.000000e+00 : f32
    %58 = vector.broadcast %cst_23 : f32 to vector<8x1xf32>
    %59 = arith.maximumf %57, %58 : vector<8x1xf32>
    %60 = vector.extract_strided_slice %8 {offsets = [0, 0], sizes = [16, 1], strides = [1, 1]} : vector<16x4xf32> to vector<16x1xf32>
    %61 = vector.extract_strided_slice %59 {offsets = [0, 0], sizes = [1, 1], strides = [1, 1]} : vector<8x1xf32> to vector<1x1xf32>
    %62 = vector.broadcast %61 : vector<1x1xf32> to vector<16x1xf32>
    %63 = arith.mulf %60, %62 : vector<16x1xf32>
    %64 = arith.addf %9, %63 : vector<16x1xf32>
    %65 = vector.extract_strided_slice %8 {offsets = [0, 1], sizes = [16, 1], strides = [1, 1]} : vector<16x4xf32> to vector<16x1xf32>
    %66 = vector.extract_strided_slice %59 {offsets = [1, 0], sizes = [1, 1], strides = [1, 1]} : vector<8x1xf32> to vector<1x1xf32>
    %67 = vector.broadcast %66 : vector<1x1xf32> to vector<16x1xf32>
    %68 = arith.mulf %65, %67 : vector<16x1xf32>
    %69 = arith.addf %64, %68 : vector<16x1xf32>
    %70 = vector.extract_strided_slice %8 {offsets = [0, 2], sizes = [16, 1], strides = [1, 1]} : vector<16x4xf32> to vector<16x1xf32>
    %71 = vector.extract_strided_slice %59 {offsets = [2, 0], sizes = [1, 1], strides = [1, 1]} : vector<8x1xf32> to vector<1x1xf32>
    %72 = vector.broadcast %71 : vector<1x1xf32> to vector<16x1xf32>
    %73 = arith.mulf %70, %72 : vector<16x1xf32>
    %74 = arith.addf %69, %73 : vector<16x1xf32>
    %75 = vector.extract_strided_slice %8 {offsets = [0, 3], sizes = [16, 1], strides = [1, 1]} : vector<16x4xf32> to vector<16x1xf32>
    %76 = vector.extract_strided_slice %59 {offsets = [3, 0], sizes = [1, 1], strides = [1, 1]} : vector<8x1xf32> to vector<1x1xf32>
    %77 = vector.broadcast %76 : vector<1x1xf32> to vector<16x1xf32>
    %78 = arith.mulf %75, %77 : vector<16x1xf32>
    %79 = arith.addf %74, %78 : vector<16x1xf32>
    %80 = vector.extract_strided_slice %8 {offsets = [0, 0], sizes = [16, 1], strides = [1, 1]} : vector<16x4xf32> to vector<16x1xf32>
    %81 = vector.extract_strided_slice %59 {offsets = [4, 0], sizes = [1, 1], strides = [1, 1]} : vector<8x1xf32> to vector<1x1xf32>
    %82 = vector.broadcast %81 : vector<1x1xf32> to vector<16x1xf32>
    %83 = arith.mulf %80, %82 : vector<16x1xf32>
    %84 = arith.addf %9, %83 : vector<16x1xf32>
    %85 = vector.extract_strided_slice %8 {offsets = [0, 1], sizes = [16, 1], strides = [1, 1]} : vector<16x4xf32> to vector<16x1xf32>
    %86 = vector.extract_strided_slice %59 {offsets = [5, 0], sizes = [1, 1], strides = [1, 1]} : vector<8x1xf32> to vector<1x1xf32>
    %87 = vector.broadcast %86 : vector<1x1xf32> to vector<16x1xf32>
    %88 = arith.mulf %85, %87 : vector<16x1xf32>
    %89 = arith.addf %84, %88 : vector<16x1xf32>
    %90 = vector.extract_strided_slice %8 {offsets = [0, 2], sizes = [16, 1], strides = [1, 1]} : vector<16x4xf32> to vector<16x1xf32>
    %91 = vector.extract_strided_slice %59 {offsets = [6, 0], sizes = [1, 1], strides = [1, 1]} : vector<8x1xf32> to vector<1x1xf32>
    %92 = vector.broadcast %91 : vector<1x1xf32> to vector<16x1xf32>
    %93 = arith.mulf %90, %92 : vector<16x1xf32>
    %94 = arith.addf %89, %93 : vector<16x1xf32>
    %95 = vector.extract_strided_slice %8 {offsets = [0, 3], sizes = [16, 1], strides = [1, 1]} : vector<16x4xf32> to vector<16x1xf32>
    %96 = vector.extract_strided_slice %59 {offsets = [7, 0], sizes = [1, 1], strides = [1, 1]} : vector<8x1xf32> to vector<1x1xf32>
    %97 = vector.broadcast %96 : vector<1x1xf32> to vector<16x1xf32>
    %98 = arith.mulf %95, %97 : vector<16x1xf32>
    %99 = arith.addf %94, %98 : vector<16x1xf32>
    %100 = tpu.concatenate %79, %99 in 1 : vector<16x1xf32>, vector<16x1xf32> -> vector<16x2xf32>
    %c0_24 = arith.constant 0 : index
    %c0_25 = arith.constant 0 : index
    %c0_26 = arith.constant 0 : index
    %101 = vector.load %arg14[%c0_24, %c0_25, %c0_26] : memref<1x16x2xf32, #tpu.memory_space<vmem>>, vector<1x16x2xf32>
    %102 = vector.shape_cast %101 : vector<1x16x2xf32> to vector<16x2xf32>
    %103 = vector.shape_cast %100 : vector<16x2xf32> to vector<1x16x2xf32>
    tpu.vector_store %arg14[%c0_24, %c0_25, %c0_26], %103 {strides = array<i32>} : memref<1x16x2xf32, #tpu.memory_space<vmem>>, vector<1x16x2xf32>,
    %104 = vector.broadcast %59 : vector<8x1xf32> to vector<8x256xf32>
    %105 = arith.addf %0, %104 : vector<8x256xf32>
    %c17_i32 = arith.constant 17 : i32
    %106 = tpu.dynamic_rotate %105 by %c17_i32 dim 1 : vector<8x256xf32>, i32 -> vector<8x256xf32>
    %c0_27 = arith.constant 0 : index
    %c0_28 = arith.constant 0 : index
    %c0_29 = arith.constant 0 : index
    %107 = vector.load %arg12[%c0_27, %c0_28, %c0_29] : memref<9x8x256xf32, #tpu.memory_space<vmem>>, vector<1x8x256xf32>
    %108 = vector.shape_cast %107 : vector<1x8x256xf32> to vector<8x256xf32>
    %109 = arith.mulf %106, %108 : vector<8x256xf32>
    %110 = vector.extract_strided_slice %10 {offsets = [0, 0, 0], sizes = [1, 8, 8], strides = [1, 1, 1]} : vector<9x8x8xf32> to vector<1x8x8xf32>
    %111 = vector.shape_cast %110 : vector<1x8x8xf32> to vector<8x8xf32>
    %112 = vector.extract_strided_slice %111 {offsets = [0, 0], sizes = [8, 1], strides = [1, 1]} : vector<8x8xf32> to vector<8x1xf32>
    %113 = vector.extract_strided_slice %109 {offsets = [0, 0], sizes = [1, 256], strides = [1, 1]} : vector<8x256xf32> to vector<1x256xf32>
    %114 = vector.broadcast %112 : vector<8x1xf32> to vector<8x256xf32>
    %115 = vector.broadcast %113 : vector<1x256xf32> to vector<8x256xf32>
    %116 = arith.mulf %114, %115 : vector<8x256xf32>
    %117 = vector.extract_strided_slice %111 {offsets = [0, 1], sizes = [8, 1], strides = [1, 1]} : vector<8x8xf32> to vector<8x1xf32>
    %118 = vector.extract_strided_slice %109 {offsets = [1, 0], sizes = [1, 256], strides = [1, 1]} : vector<8x256xf32> to vector<1x256xf32>
    %119 = vector.broadcast %117 : vector<8x1xf32> to vector<8x256xf32>
    %120 = vector.broadcast %118 : vector<1x256xf32> to vector<8x256xf32>
    %121 = arith.mulf %119, %120 : vector<8x256xf32>
    %122 = vector.extract_strided_slice %111 {offsets = [0, 2], sizes = [8, 1], strides = [1, 1]} : vector<8x8xf32> to vector<8x1xf32>
    %123 = vector.extract_strided_slice %109 {offsets = [2, 0], sizes = [1, 256], strides = [1, 1]} : vector<8x256xf32> to vector<1x256xf32>
    %124 = vector.broadcast %122 : vector<8x1xf32> to vector<8x256xf32>
    %125 = vector.broadcast %123 : vector<1x256xf32> to vector<8x256xf32>
    %126 = arith.mulf %124, %125 : vector<8x256xf32>
    %127 = vector.extract_strided_slice %111 {offsets = [0, 3], sizes = [8, 1], strides = [1, 1]} : vector<8x8xf32> to vector<8x1xf32>
    %128 = vector.extract_strided_slice %109 {offsets = [3, 0], sizes = [1, 256], strides = [1, 1]} : vector<8x256xf32> to vector<1x256xf32>
    %129 = vector.broadcast %127 : vector<8x1xf32> to vector<8x256xf32>
    %130 = vector.broadcast %128 : vector<1x256xf32> to vector<8x256xf32>
    %131 = arith.mulf %129, %130 : vector<8x256xf32>
    %132 = vector.extract_strided_slice %111 {offsets = [0, 4], sizes = [8, 1], strides = [1, 1]} : vector<8x8xf32> to vector<8x1xf32>
    %133 = vector.extract_strided_slice %109 {offsets = [4, 0], sizes = [1, 256], strides = [1, 1]} : vector<8x256xf32> to vector<1x256xf32>
    %134 = vector.broadcast %132 : vector<8x1xf32> to vector<8x256xf32>
    %135 = vector.broadcast %133 : vector<1x256xf32> to vector<8x256xf32>
    %136 = arith.mulf %134, %135 : vector<8x256xf32>
    %137 = arith.addf %116, %136 : vector<8x256xf32>
    %138 = vector.extract_strided_slice %111 {offsets = [0, 5], sizes = [8, 1], strides = [1, 1]} : vector<8x8xf32> to vector<8x1xf32>
    %139 = vector.extract_strided_slice %109 {offsets = [5, 0], sizes = [1, 256], strides = [1, 1]} : vector<8x256xf32> to vector<1x256xf32>
    %140 = vector.broadcast %138 : vector<8x1xf32> to vector<8x256xf32>
    %141 = vector.broadcast %139 : vector<1x256xf32> to vector<8x256xf32>
    %142 = arith.mulf %140, %141 : vector<8x256xf32>
    %143 = arith.addf %121, %142 : vector<8x256xf32>
    %144 = vector.extract_strided_slice %111 {offsets = [0, 6], sizes = [8, 1], strides = [1, 1]} : vector<8x8xf32> to vector<8x1xf32>
    %145 = vector.extract_strided_slice %109 {offsets = [6, 0], sizes = [1, 256], strides = [1, 1]} : vector<8x256xf32> to vector<1x256xf32>
    %146 = vector.broadcast %144 : vector<8x1xf32> to vector<8x256xf32>
    %147 = vector.broadcast %145 : vector<1x256xf32> to vector<8x256xf32>
    %148 = arith.mulf %146, %147 : vector<8x256xf32>
    %149 = arith.addf %126, %148 : vector<8x256xf32>
    %150 = vector.extract_strided_slice %111 {offsets = [0, 7], sizes = [8, 1], strides = [1, 1]} : vector<8x8xf32> to vector<8x1xf32>
    %151 = vector.extract_strided_slice %109 {offsets = [7, 0], sizes = [1, 256], strides = [1, 1]} : vector<8x256xf32> to vector<1x256xf32>
    %152 = vector.broadcast %150 : vector<8x1xf32> to vector<8x256xf32>
    %153 = vector.broadcast %151 : vector<1x256xf32> to vector<8x256xf32>
    %154 = arith.mulf %152, %153 : vector<8x256xf32>
    %155 = arith.addf %131, %154 : vector<8x256xf32>
    %c16_i32 = arith.constant 16 : i32
    %156 = tpu.dynamic_rotate %105 by %c16_i32 dim 1 : vector<8x256xf32>, i32 -> vector<8x256xf32>
    %c1 = arith.constant 1 : index
    %c0_30 = arith.constant 0 : index
    %c0_31 = arith.constant 0 : index
    %157 = vector.load %arg12[%c1, %c0_30, %c0_31] : memref<9x8x256xf32, #tpu.memory_space<vmem>>, vector<1x8x256xf32>
    %158 = vector.shape_cast %157 : vector<1x8x256xf32> to vector<8x256xf32>
    %159 = arith.mulf %156, %158 : vector<8x256xf32>
    %160 = vector.extract_strided_slice %10 {offsets = [1, 0, 0], sizes = [1, 8, 8], strides = [1, 1, 1]} : vector<9x8x8xf32> to vector<1x8x8xf32>
    %161 = vector.shape_cast %160 : vector<1x8x8xf32> to vector<8x8xf32>
    %162 = vector.extract_strided_slice %161 {offsets = [0, 0], sizes = [8, 1], strides = [1, 1]} : vector<8x8xf32> to vector<8x1xf32>
    %163 = vector.extract_strided_slice %159 {offsets = [0, 0], sizes = [1, 256], strides = [1, 1]} : vector<8x256xf32> to vector<1x256xf32>
    %164 = vector.broadcast %162 : vector<8x1xf32> to vector<8x256xf32>
    %165 = vector.broadcast %163 : vector<1x256xf32> to vector<8x256xf32>
    %166 = arith.mulf %164, %165 : vector<8x256xf32>
    %167 = arith.addf %137, %166 : vector<8x256xf32>
    %168 = vector.extract_strided_slice %161 {offsets = [0, 1], sizes = [8, 1], strides = [1, 1]} : vector<8x8xf32> to vector<8x1xf32>
    %169 = vector.extract_strided_slice %159 {offsets = [1, 0], sizes = [1, 256], strides = [1, 1]} : vector<8x256xf32> to vector<1x256xf32>
    %170 = vector.broadcast %168 : vector<8x1xf32> to vector<8x256xf32>
    %171 = vector.broadcast %169 : vector<1x256xf32> to vector<8x256xf32>
    %172 = arith.mulf %170, %171 : vector<8x256xf32>
    %173 = arith.addf %143, %172 : vector<8x256xf32>
    %174 = vector.extract_strided_slice %161 {offsets = [0, 2], sizes = [8, 1], strides = [1, 1]} : vector<8x8xf32> to vector<8x1xf32>
    %175 = vector.extract_strided_slice %159 {offsets = [2, 0], sizes = [1, 256], strides = [1, 1]} : vector<8x256xf32> to vector<1x256xf32>
    %176 = vector.broadcast %174 : vector<8x1xf32> to vector<8x256xf32>
    %177 = vector.broadcast %175 : vector<1x256xf32> to vector<8x256xf32>
    %178 = arith.mulf %176, %177 : vector<8x256xf32>
    %179 = arith.addf %149, %178 : vector<8x256xf32>
    %180 = vector.extract_strided_slice %161 {offsets = [0, 3], sizes = [8, 1], strides = [1, 1]} : vector<8x8xf32> to vector<8x1xf32>
    %181 = vector.extract_strided_slice %159 {offsets = [3, 0], sizes = [1, 256], strides = [1, 1]} : vector<8x256xf32> to vector<1x256xf32>
    %182 = vector.broadcast %180 : vector<8x1xf32> to vector<8x256xf32>
    %183 = vector.broadcast %181 : vector<1x256xf32> to vector<8x256xf32>
    %184 = arith.mulf %182, %183 : vector<8x256xf32>
    %185 = arith.addf %155, %184 : vector<8x256xf32>
    %186 = vector.extract_strided_slice %161 {offsets = [0, 4], sizes = [8, 1], strides = [1, 1]} : vector<8x8xf32> to vector<8x1xf32>
    %187 = vector.extract_strided_slice %159 {offsets = [4, 0], sizes = [1, 256], strides = [1, 1]} : vector<8x256xf32> to vector<1x256xf32>
    %188 = vector.broadcast %186 : vector<8x1xf32> to vector<8x256xf32>
    %189 = vector.broadcast %187 : vector<1x256xf32> to vector<8x256xf32>
    %190 = arith.mulf %188, %189 : vector<8x256xf32>
    %191 = arith.addf %167, %190 : vector<8x256xf32>
    %192 = vector.extract_strided_slice %161 {offsets = [0, 5], sizes = [8, 1], strides = [1, 1]} : vector<8x8xf32> to vector<8x1xf32>
    %193 = vector.extract_strided_slice %159 {offsets = [5, 0], sizes = [1, 256], strides = [1, 1]} : vector<8x256xf32> to vector<1x256xf32>
    %194 = vector.broadcast %192 : vector<8x1xf32> to vector<8x256xf32>
    %195 = vector.broadcast %193 : vector<1x256xf32> to vector<8x256xf32>
    %196 = arith.mulf %194, %195 : vector<8x256xf32>
    %197 = arith.addf %173, %196 : vector<8x256xf32>
    %198 = vector.extract_strided_slice %161 {offsets = [0, 6], sizes = [8, 1], strides = [1, 1]} : vector<8x8xf32> to vector<8x1xf32>
    %199 = vector.extract_strided_slice %159 {offsets = [6, 0], sizes = [1, 256], strides = [1, 1]} : vector<8x256xf32> to vector<1x256xf32>
    %200 = vector.broadcast %198 : vector<8x1xf32> to vector<8x256xf32>
    %201 = vector.broadcast %199 : vector<1x256xf32> to vector<8x256xf32>
    %202 = arith.mulf %200, %201 : vector<8x256xf32>
    %203 = arith.addf %179, %202 : vector<8x256xf32>
    %204 = vector.extract_strided_slice %161 {offsets = [0, 7], sizes = [8, 1], strides = [1, 1]} : vector<8x8xf32> to vector<8x1xf32>
    %205 = vector.extract_strided_slice %159 {offsets = [7, 0], sizes = [1, 256], strides = [1, 1]} : vector<8x256xf32> to vector<1x256xf32>
    %206 = vector.broadcast %204 : vector<8x1xf32> to vector<8x256xf32>
    %207 = vector.broadcast %205 : vector<1x256xf32> to vector<8x256xf32>
    %208 = arith.mulf %206, %207 : vector<8x256xf32>
    %209 = arith.addf %185, %208 : vector<8x256xf32>
    %c15_i32 = arith.constant 15 : i32
    %210 = tpu.dynamic_rotate %105 by %c15_i32 dim 1 : vector<8x256xf32>, i32 -> vector<8x256xf32>
    %c2 = arith.constant 2 : index
    %c0_32 = arith.constant 0 : index
    %c0_33 = arith.constant 0 : index
    %211 = vector.load %arg12[%c2, %c0_32, %c0_33] : memref<9x8x256xf32, #tpu.memory_space<vmem>>, vector<1x8x256xf32>
    %212 = vector.shape_cast %211 : vector<1x8x256xf32> to vector<8x256xf32>
    %213 = arith.mulf %210, %212 : vector<8x256xf32>
    %214 = vector.extract_strided_slice %10 {offsets = [2, 0, 0], sizes = [1, 8, 8], strides = [1, 1, 1]} : vector<9x8x8xf32> to vector<1x8x8xf32>
    %215 = vector.shape_cast %214 : vector<1x8x8xf32> to vector<8x8xf32>
    %216 = vector.extract_strided_slice %215 {offsets = [0, 0], sizes = [8, 1], strides = [1, 1]} : vector<8x8xf32> to vector<8x1xf32>
    %217 = vector.extract_strided_slice %213 {offsets = [0, 0], sizes = [1, 256], strides = [1, 1]} : vector<8x256xf32> to vector<1x256xf32>
    %218 = vector.broadcast %216 : vector<8x1xf32> to vector<8x256xf32>
    %219 = vector.broadcast %217 : vector<1x256xf32> to vector<8x256xf32>
    %220 = arith.mulf %218, %219 : vector<8x256xf32>
    %221 = arith.addf %191, %220 : vector<8x256xf32>
    %222 = vector.extract_strided_slice %215 {offsets = [0, 1], sizes = [8, 1], strides = [1, 1]} : vector<8x8xf32> to vector<8x1xf32>
    %223 = vector.extract_strided_slice %213 {offsets = [1, 0], sizes = [1, 256], strides = [1, 1]} : vector<8x256xf32> to vector<1x256xf32>
    %224 = vector.broadcast %222 : vector<8x1xf32> to vector<8x256xf32>
    %225 = vector.broadcast %223 : vector<1x256xf32> to vector<8x256xf32>
    %226 = arith.mulf %224, %225 : vector<8x256xf32>
    %227 = arith.addf %197, %226 : vector<8x256xf32>
    %228 = vector.extract_strided_slice %215 {offsets = [0, 2], sizes = [8, 1], strides = [1, 1]} : vector<8x8xf32> to vector<8x1xf32>
    %229 = vector.extract_strided_slice %213 {offsets = [2, 0], sizes = [1, 256], strides = [1, 1]} : vector<8x256xf32> to vector<1x256xf32>
    %230 = vector.broadcast %228 : vector<8x1xf32> to vector<8x256xf32>
    %231 = vector.broadcast %229 : vector<1x256xf32> to vector<8x256xf32>
    %232 = arith.mulf %230, %231 : vector<8x256xf32>
    %233 = arith.addf %203, %232 : vector<8x256xf32>
    %234 = vector.extract_strided_slice %215 {offsets = [0, 3], sizes = [8, 1], strides = [1, 1]} : vector<8x8xf32> to vector<8x1xf32>
    %235 = vector.extract_strided_slice %213 {offsets = [3, 0], sizes = [1, 256], strides = [1, 1]} : vector<8x256xf32> to vector<1x256xf32>
    %236 = vector.broadcast %234 : vector<8x1xf32> to vector<8x256xf32>
    %237 = vector.broadcast %235 : vector<1x256xf32> to vector<8x256xf32>
    %238 = arith.mulf %236, %237 : vector<8x256xf32>
    %239 = arith.addf %209, %238 : vector<8x256xf32>
    %240 = vector.extract_strided_slice %215 {offsets = [0, 4], sizes = [8, 1], strides = [1, 1]} : vector<8x8xf32> to vector<8x1xf32>
    %241 = vector.extract_strided_slice %213 {offsets = [4, 0], sizes = [1, 256], strides = [1, 1]} : vector<8x256xf32> to vector<1x256xf32>
    %242 = vector.broadcast %240 : vector<8x1xf32> to vector<8x256xf32>
    %243 = vector.broadcast %241 : vector<1x256xf32> to vector<8x256xf32>
    %244 = arith.mulf %242, %243 : vector<8x256xf32>
    %245 = arith.addf %221, %244 : vector<8x256xf32>
    %246 = vector.extract_strided_slice %215 {offsets = [0, 5], sizes = [8, 1], strides = [1, 1]} : vector<8x8xf32> to vector<8x1xf32>
    %247 = vector.extract_strided_slice %213 {offsets = [5, 0], sizes = [1, 256], strides = [1, 1]} : vector<8x256xf32> to vector<1x256xf32>
    %248 = vector.broadcast %246 : vector<8x1xf32> to vector<8x256xf32>
    %249 = vector.broadcast %247 : vector<1x256xf32> to vector<8x256xf32>
    %250 = arith.mulf %248, %249 : vector<8x256xf32>
    %251 = arith.addf %227, %250 : vector<8x256xf32>
    %252 = vector.extract_strided_slice %215 {offsets = [0, 6], sizes = [8, 1], strides = [1, 1]} : vector<8x8xf32> to vector<8x1xf32>
    %253 = vector.extract_strided_slice %213 {offsets = [6, 0], sizes = [1, 256], strides = [1, 1]} : vector<8x256xf32> to vector<1x256xf32>
    %254 = vector.broadcast %252 : vector<8x1xf32> to vector<8x256xf32>
    %255 = vector.broadcast %253 : vector<1x256xf32> to vector<8x256xf32>
    %256 = arith.mulf %254, %255 : vector<8x256xf32>
    %257 = arith.addf %233, %256 : vector<8x256xf32>
    %258 = vector.extract_strided_slice %215 {offsets = [0, 7], sizes = [8, 1], strides = [1, 1]} : vector<8x8xf32> to vector<8x1xf32>
    %259 = vector.extract_strided_slice %213 {offsets = [7, 0], sizes = [1, 256], strides = [1, 1]} : vector<8x256xf32> to vector<1x256xf32>
    %260 = vector.broadcast %258 : vector<8x1xf32> to vector<8x256xf32>
    %261 = vector.broadcast %259 : vector<1x256xf32> to vector<8x256xf32>
    %262 = arith.mulf %260, %261 : vector<8x256xf32>
    %263 = arith.addf %239, %262 : vector<8x256xf32>
    %c1_i32 = arith.constant 1 : i32
    %264 = tpu.dynamic_rotate %105 by %c1_i32 dim 1 : vector<8x256xf32>, i32 -> vector<8x256xf32>
    %c3 = arith.constant 3 : index
    %c0_34 = arith.constant 0 : index
    %c0_35 = arith.constant 0 : index
    %265 = vector.load %arg12[%c3, %c0_34, %c0_35] : memref<9x8x256xf32, #tpu.memory_space<vmem>>, vector<1x8x256xf32>
    %266 = vector.shape_cast %265 : vector<1x8x256xf32> to vector<8x256xf32>
    %267 = arith.mulf %264, %266 : vector<8x256xf32>
    %268 = vector.extract_strided_slice %10 {offsets = [3, 0, 0], sizes = [1, 8, 8], strides = [1, 1, 1]} : vector<9x8x8xf32> to vector<1x8x8xf32>
    %269 = vector.shape_cast %268 : vector<1x8x8xf32> to vector<8x8xf32>
    %270 = vector.extract_strided_slice %269 {offsets = [0, 0], sizes = [8, 1], strides = [1, 1]} : vector<8x8xf32> to vector<8x1xf32>
    %271 = vector.extract_strided_slice %267 {offsets = [0, 0], sizes = [1, 256], strides = [1, 1]} : vector<8x256xf32> to vector<1x256xf32>
    %272 = vector.broadcast %270 : vector<8x1xf32> to vector<8x256xf32>
    %273 = vector.broadcast %271 : vector<1x256xf32> to vector<8x256xf32>
    %274 = arith.mulf %272, %273 : vector<8x256xf32>
    %275 = arith.addf %245, %274 : vector<8x256xf32>
    %276 = vector.extract_strided_slice %269 {offsets = [0, 1], sizes = [8, 1], strides = [1, 1]} : vector<8x8xf32> to vector<8x1xf32>
    %277 = vector.extract_strided_slice %267 {offsets = [1, 0], sizes = [1, 256], strides = [1, 1]} : vector<8x256xf32> to vector<1x256xf32>
    %278 = vector.broadcast %276 : vector<8x1xf32> to vector<8x256xf32>
    %279 = vector.broadcast %277 : vector<1x256xf32> to vector<8x256xf32>
    %280 = arith.mulf %278, %279 : vector<8x256xf32>
    %281 = arith.addf %251, %280 : vector<8x256xf32>
    %282 = vector.extract_strided_slice %269 {offsets = [0, 2], sizes = [8, 1], strides = [1, 1]} : vector<8x8xf32> to vector<8x1xf32>
    %283 = vector.extract_strided_slice %267 {offsets = [2, 0], sizes = [1, 256], strides = [1, 1]} : vector<8x256xf32> to vector<1x256xf32>
    %284 = vector.broadcast %282 : vector<8x1xf32> to vector<8x256xf32>
    %285 = vector.broadcast %283 : vector<1x256xf32> to vector<8x256xf32>
    %286 = arith.mulf %284, %285 : vector<8x256xf32>
    %287 = arith.addf %257, %286 : vector<8x256xf32>
    %288 = vector.extract_strided_slice %269 {offsets = [0, 3], sizes = [8, 1], strides = [1, 1]} : vector<8x8xf32> to vector<8x1xf32>
    %289 = vector.extract_strided_slice %267 {offsets = [3, 0], sizes = [1, 256], strides = [1, 1]} : vector<8x256xf32> to vector<1x256xf32>
    %290 = vector.broadcast %288 : vector<8x1xf32> to vector<8x256xf32>
    %291 = vector.broadcast %289 : vector<1x256xf32> to vector<8x256xf32>
    %292 = arith.mulf %290, %291 : vector<8x256xf32>
    %293 = arith.addf %263, %292 : vector<8x256xf32>
    %294 = vector.extract_strided_slice %269 {offsets = [0, 4], sizes = [8, 1], strides = [1, 1]} : vector<8x8xf32> to vector<8x1xf32>
    %295 = vector.extract_strided_slice %267 {offsets = [4, 0], sizes = [1, 256], strides = [1, 1]} : vector<8x256xf32> to vector<1x256xf32>
    %296 = vector.broadcast %294 : vector<8x1xf32> to vector<8x256xf32>
    %297 = vector.broadcast %295 : vector<1x256xf32> to vector<8x256xf32>
    %298 = arith.mulf %296, %297 : vector<8x256xf32>
    %299 = arith.addf %275, %298 : vector<8x256xf32>
    %300 = vector.extract_strided_slice %269 {offsets = [0, 5], sizes = [8, 1], strides = [1, 1]} : vector<8x8xf32> to vector<8x1xf32>
    %301 = vector.extract_strided_slice %267 {offsets = [5, 0], sizes = [1, 256], strides = [1, 1]} : vector<8x256xf32> to vector<1x256xf32>
    %302 = vector.broadcast %300 : vector<8x1xf32> to vector<8x256xf32>
    %303 = vector.broadcast %301 : vector<1x256xf32> to vector<8x256xf32>
    %304 = arith.mulf %302, %303 : vector<8x256xf32>
    %305 = arith.addf %281, %304 : vector<8x256xf32>
    %306 = vector.extract_strided_slice %269 {offsets = [0, 6], sizes = [8, 1], strides = [1, 1]} : vector<8x8xf32> to vector<8x1xf32>
    %307 = vector.extract_strided_slice %267 {offsets = [6, 0], sizes = [1, 256], strides = [1, 1]} : vector<8x256xf32> to vector<1x256xf32>
    %308 = vector.broadcast %306 : vector<8x1xf32> to vector<8x256xf32>
    %309 = vector.broadcast %307 : vector<1x256xf32> to vector<8x256xf32>
    %310 = arith.mulf %308, %309 : vector<8x256xf32>
    %311 = arith.addf %287, %310 : vector<8x256xf32>
    %312 = vector.extract_strided_slice %269 {offsets = [0, 7], sizes = [8, 1], strides = [1, 1]} : vector<8x8xf32> to vector<8x1xf32>
    %313 = vector.extract_strided_slice %267 {offsets = [7, 0], sizes = [1, 256], strides = [1, 1]} : vector<8x256xf32> to vector<1x256xf32>
    %314 = vector.broadcast %312 : vector<8x1xf32> to vector<8x256xf32>
    %315 = vector.broadcast %313 : vector<1x256xf32> to vector<8x256xf32>
    %316 = arith.mulf %314, %315 : vector<8x256xf32>
    %317 = arith.addf %293, %316 : vector<8x256xf32>
    %318 = vector.extract_strided_slice %10 {offsets = [4, 0, 0], sizes = [1, 8, 8], strides = [1, 1, 1]} : vector<9x8x8xf32> to vector<1x8x8xf32>
    %319 = vector.shape_cast %318 : vector<1x8x8xf32> to vector<8x8xf32>
    %320 = vector.extract_strided_slice %319 {offsets = [0, 0], sizes = [8, 1], strides = [1, 1]} : vector<8x8xf32> to vector<8x1xf32>
    %321 = vector.extract_strided_slice %105 {offsets = [0, 0], sizes = [1, 256], strides = [1, 1]} : vector<8x256xf32> to vector<1x256xf32>
    %322 = vector.broadcast %320 : vector<8x1xf32> to vector<8x256xf32>
    %323 = vector.broadcast %321 : vector<1x256xf32> to vector<8x256xf32>
    %324 = arith.mulf %322, %323 : vector<8x256xf32>
    %325 = arith.addf %299, %324 : vector<8x256xf32>
    %326 = vector.extract_strided_slice %319 {offsets = [0, 1], sizes = [8, 1], strides = [1, 1]} : vector<8x8xf32> to vector<8x1xf32>
    %327 = vector.extract_strided_slice %105 {offsets = [1, 0], sizes = [1, 256], strides = [1, 1]} : vector<8x256xf32> to vector<1x256xf32>
    %328 = vector.broadcast %326 : vector<8x1xf32> to vector<8x256xf32>
    %329 = vector.broadcast %327 : vector<1x256xf32> to vector<8x256xf32>
    %330 = arith.mulf %328, %329 : vector<8x256xf32>
    %331 = arith.addf %305, %330 : vector<8x256xf32>
    %332 = vector.extract_strided_slice %319 {offsets = [0, 2], sizes = [8, 1], strides = [1, 1]} : vector<8x8xf32> to vector<8x1xf32>
    %333 = vector.extract_strided_slice %105 {offsets = [2, 0], sizes = [1, 256], strides = [1, 1]} : vector<8x256xf32> to vector<1x256xf32>
    %334 = vector.broadcast %332 : vector<8x1xf32> to vector<8x256xf32>
    %335 = vector.broadcast %333 : vector<1x256xf32> to vector<8x256xf32>
    %336 = arith.mulf %334, %335 : vector<8x256xf32>
    %337 = arith.addf %311, %336 : vector<8x256xf32>
    %338 = vector.extract_strided_slice %319 {offsets = [0, 3], sizes = [8, 1], strides = [1, 1]} : vector<8x8xf32> to vector<8x1xf32>
    %339 = vector.extract_strided_slice %105 {offsets = [3, 0], sizes = [1, 256], strides = [1, 1]} : vector<8x256xf32> to vector<1x256xf32>
    %340 = vector.broadcast %338 : vector<8x1xf32> to vector<8x256xf32>
    %341 = vector.broadcast %339 : vector<1x256xf32> to vector<8x256xf32>
    %342 = arith.mulf %340, %341 : vector<8x256xf32>
    %343 = arith.addf %317, %342 : vector<8x256xf32>
    %344 = vector.extract_strided_slice %319 {offsets = [0, 4], sizes = [8, 1], strides = [1, 1]} : vector<8x8xf32> to vector<8x1xf32>
    %345 = vector.extract_strided_slice %105 {offsets = [4, 0], sizes = [1, 256], strides = [1, 1]} : vector<8x256xf32> to vector<1x256xf32>
    %346 = vector.broadcast %344 : vector<8x1xf32> to vector<8x256xf32>
    %347 = vector.broadcast %345 : vector<1x256xf32> to vector<8x256xf32>
    %348 = arith.mulf %346, %347 : vector<8x256xf32>
    %349 = arith.addf %325, %348 : vector<8x256xf32>
    %350 = vector.extract_strided_slice %319 {offsets = [0, 5], sizes = [8, 1], strides = [1, 1]} : vector<8x8xf32> to vector<8x1xf32>
    %351 = vector.extract_strided_slice %105 {offsets = [5, 0], sizes = [1, 256], strides = [1, 1]} : vector<8x256xf32> to vector<1x256xf32>
    %352 = vector.broadcast %350 : vector<8x1xf32> to vector<8x256xf32>
    %353 = vector.broadcast %351 : vector<1x256xf32> to vector<8x256xf32>
    %354 = arith.mulf %352, %353 : vector<8x256xf32>
    %355 = arith.addf %331, %354 : vector<8x256xf32>
    %356 = vector.extract_strided_slice %319 {offsets = [0, 6], sizes = [8, 1], strides = [1, 1]} : vector<8x8xf32> to vector<8x1xf32>
    %357 = vector.extract_strided_slice %105 {offsets = [6, 0], sizes = [1, 256], strides = [1, 1]} : vector<8x256xf32> to vector<1x256xf32>
    %358 = vector.broadcast %356 : vector<8x1xf32> to vector<8x256xf32>
    %359 = vector.broadcast %357 : vector<1x256xf32> to vector<8x256xf32>
    %360 = arith.mulf %358, %359 : vector<8x256xf32>
    %361 = arith.addf %337, %360 : vector<8x256xf32>
    %362 = vector.extract_strided_slice %319 {offsets = [0, 7], sizes = [8, 1], strides = [1, 1]} : vector<8x8xf32> to vector<8x1xf32>
    %363 = vector.extract_strided_slice %105 {offsets = [7, 0], sizes = [1, 256], strides = [1, 1]} : vector<8x256xf32> to vector<1x256xf32>
    %364 = vector.broadcast %362 : vector<8x1xf32> to vector<8x256xf32>
    %365 = vector.broadcast %363 : vector<1x256xf32> to vector<8x256xf32>
    %366 = arith.mulf %364, %365 : vector<8x256xf32>
    %367 = arith.addf %343, %366 : vector<8x256xf32>
    %c255_i32 = arith.constant 255 : i32
    %368 = tpu.dynamic_rotate %105 by %c255_i32 dim 1 : vector<8x256xf32>, i32 -> vector<8x256xf32>
    %c5 = arith.constant 5 : index
    %c0_36 = arith.constant 0 : index
    %c0_37 = arith.constant 0 : index
    %369 = vector.load %arg12[%c5, %c0_36, %c0_37] : memref<9x8x256xf32, #tpu.memory_space<vmem>>, vector<1x8x256xf32>
    %370 = vector.shape_cast %369 : vector<1x8x256xf32> to vector<8x256xf32>
    %371 = arith.mulf %368, %370 : vector<8x256xf32>
    %372 = vector.extract_strided_slice %10 {offsets = [5, 0, 0], sizes = [1, 8, 8], strides = [1, 1, 1]} : vector<9x8x8xf32> to vector<1x8x8xf32>
    %373 = vector.shape_cast %372 : vector<1x8x8xf32> to vector<8x8xf32>
    %374 = vector.extract_strided_slice %373 {offsets = [0, 0], sizes = [8, 1], strides = [1, 1]} : vector<8x8xf32> to vector<8x1xf32>
    %375 = vector.extract_strided_slice %371 {offsets = [0, 0], sizes = [1, 256], strides = [1, 1]} : vector<8x256xf32> to vector<1x256xf32>
    %376 = vector.broadcast %374 : vector<8x1xf32> to vector<8x256xf32>
    %377 = vector.broadcast %375 : vector<1x256xf32> to vector<8x256xf32>
    %378 = arith.mulf %376, %377 : vector<8x256xf32>
    %379 = arith.addf %349, %378 : vector<8x256xf32>
    %380 = vector.extract_strided_slice %373 {offsets = [0, 1], sizes = [8, 1], strides = [1, 1]} : vector<8x8xf32> to vector<8x1xf32>
    %381 = vector.extract_strided_slice %371 {offsets = [1, 0], sizes = [1, 256], strides = [1, 1]} : vector<8x256xf32> to vector<1x256xf32>
    %382 = vector.broadcast %380 : vector<8x1xf32> to vector<8x256xf32>
    %383 = vector.broadcast %381 : vector<1x256xf32> to vector<8x256xf32>
    %384 = arith.mulf %382, %383 : vector<8x256xf32>
    %385 = arith.addf %355, %384 : vector<8x256xf32>
    %386 = vector.extract_strided_slice %373 {offsets = [0, 2], sizes = [8, 1], strides = [1, 1]} : vector<8x8xf32> to vector<8x1xf32>
    %387 = vector.extract_strided_slice %371 {offsets = [2, 0], sizes = [1, 256], strides = [1, 1]} : vector<8x256xf32> to vector<1x256xf32>
    %388 = vector.broadcast %386 : vector<8x1xf32> to vector<8x256xf32>
    %389 = vector.broadcast %387 : vector<1x256xf32> to vector<8x256xf32>
    %390 = arith.mulf %388, %389 : vector<8x256xf32>
    %391 = arith.addf %361, %390 : vector<8x256xf32>
    %392 = vector.extract_strided_slice %373 {offsets = [0, 3], sizes = [8, 1], strides = [1, 1]} : vector<8x8xf32> to vector<8x1xf32>
    %393 = vector.extract_strided_slice %371 {offsets = [3, 0], sizes = [1, 256], strides = [1, 1]} : vector<8x256xf32> to vector<1x256xf32>
    %394 = vector.broadcast %392 : vector<8x1xf32> to vector<8x256xf32>
    %395 = vector.broadcast %393 : vector<1x256xf32> to vector<8x256xf32>
    %396 = arith.mulf %394, %395 : vector<8x256xf32>
    %397 = arith.addf %367, %396 : vector<8x256xf32>
    %398 = vector.extract_strided_slice %373 {offsets = [0, 4], sizes = [8, 1], strides = [1, 1]} : vector<8x8xf32> to vector<8x1xf32>
    %399 = vector.extract_strided_slice %371 {offsets = [4, 0], sizes = [1, 256], strides = [1, 1]} : vector<8x256xf32> to vector<1x256xf32>
    %400 = vector.broadcast %398 : vector<8x1xf32> to vector<8x256xf32>
    %401 = vector.broadcast %399 : vector<1x256xf32> to vector<8x256xf32>
    %402 = arith.mulf %400, %401 : vector<8x256xf32>
    %403 = arith.addf %379, %402 : vector<8x256xf32>
    %404 = vector.extract_strided_slice %373 {offsets = [0, 5], sizes = [8, 1], strides = [1, 1]} : vector<8x8xf32> to vector<8x1xf32>
    %405 = vector.extract_strided_slice %371 {offsets = [5, 0], sizes = [1, 256], strides = [1, 1]} : vector<8x256xf32> to vector<1x256xf32>
    %406 = vector.broadcast %404 : vector<8x1xf32> to vector<8x256xf32>
    %407 = vector.broadcast %405 : vector<1x256xf32> to vector<8x256xf32>
    %408 = arith.mulf %406, %407 : vector<8x256xf32>
    %409 = arith.addf %385, %408 : vector<8x256xf32>
    %410 = vector.extract_strided_slice %373 {offsets = [0, 6], sizes = [8, 1], strides = [1, 1]} : vector<8x8xf32> to vector<8x1xf32>
    %411 = vector.extract_strided_slice %371 {offsets = [6, 0], sizes = [1, 256], strides = [1, 1]} : vector<8x256xf32> to vector<1x256xf32>
    %412 = vector.broadcast %410 : vector<8x1xf32> to vector<8x256xf32>
    %413 = vector.broadcast %411 : vector<1x256xf32> to vector<8x256xf32>
    %414 = arith.mulf %412, %413 : vector<8x256xf32>
    %415 = arith.addf %391, %414 : vector<8x256xf32>
    %416 = vector.extract_strided_slice %373 {offsets = [0, 7], sizes = [8, 1], strides = [1, 1]} : vector<8x8xf32> to vector<8x1xf32>
    %417 = vector.extract_strided_slice %371 {offsets = [7, 0], sizes = [1, 256], strides = [1, 1]} : vector<8x256xf32> to vector<1x256xf32>
    %418 = vector.broadcast %416 : vector<8x1xf32> to vector<8x256xf32>
    %419 = vector.broadcast %417 : vector<1x256xf32> to vector<8x256xf32>
    %420 = arith.mulf %418, %419 : vector<8x256xf32>
    %421 = arith.addf %397, %420 : vector<8x256xf32>
    %c241_i32 = arith.constant 241 : i32
    %422 = tpu.dynamic_rotate %105 by %c241_i32 dim 1 : vector<8x256xf32>, i32 -> vector<8x256xf32>
    %c6 = arith.constant 6 : index
    %c0_38 = arith.constant 0 : index
    %c0_39 = arith.constant 0 : index
    %423 = vector.load %arg12[%c6, %c0_38, %c0_39] : memref<9x8x256xf32, #tpu.memory_space<vmem>>, vector<1x8x256xf32>
    %424 = vector.shape_cast %423 : vector<1x8x256xf32> to vector<8x256xf32>
    %425 = arith.mulf %422, %424 : vector<8x256xf32>
    %426 = vector.extract_strided_slice %10 {offsets = [6, 0, 0], sizes = [1, 8, 8], strides = [1, 1, 1]} : vector<9x8x8xf32> to vector<1x8x8xf32>
    %427 = vector.shape_cast %426 : vector<1x8x8xf32> to vector<8x8xf32>
    %428 = vector.extract_strided_slice %427 {offsets = [0, 0], sizes = [8, 1], strides = [1, 1]} : vector<8x8xf32> to vector<8x1xf32>
    %429 = vector.extract_strided_slice %425 {offsets = [0, 0], sizes = [1, 256], strides = [1, 1]} : vector<8x256xf32> to vector<1x256xf32>
    %430 = vector.broadcast %428 : vector<8x1xf32> to vector<8x256xf32>
    %431 = vector.broadcast %429 : vector<1x256xf32> to vector<8x256xf32>
    %432 = arith.mulf %430, %431 : vector<8x256xf32>
    %433 = arith.addf %403, %432 : vector<8x256xf32>
    %434 = vector.extract_strided_slice %427 {offsets = [0, 1], sizes = [8, 1], strides = [1, 1]} : vector<8x8xf32> to vector<8x1xf32>
    %435 = vector.extract_strided_slice %425 {offsets = [1, 0], sizes = [1, 256], strides = [1, 1]} : vector<8x256xf32> to vector<1x256xf32>
    %436 = vector.broadcast %434 : vector<8x1xf32> to vector<8x256xf32>
    %437 = vector.broadcast %435 : vector<1x256xf32> to vector<8x256xf32>
    %438 = arith.mulf %436, %437 : vector<8x256xf32>
    %439 = arith.addf %409, %438 : vector<8x256xf32>
    %440 = vector.extract_strided_slice %427 {offsets = [0, 2], sizes = [8, 1], strides = [1, 1]} : vector<8x8xf32> to vector<8x1xf32>
    %441 = vector.extract_strided_slice %425 {offsets = [2, 0], sizes = [1, 256], strides = [1, 1]} : vector<8x256xf32> to vector<1x256xf32>
    %442 = vector.broadcast %440 : vector<8x1xf32> to vector<8x256xf32>
    %443 = vector.broadcast %441 : vector<1x256xf32> to vector<8x256xf32>
    %444 = arith.mulf %442, %443 : vector<8x256xf32>
    %445 = arith.addf %415, %444 : vector<8x256xf32>
    %446 = vector.extract_strided_slice %427 {offsets = [0, 3], sizes = [8, 1], strides = [1, 1]} : vector<8x8xf32> to vector<8x1xf32>
    %447 = vector.extract_strided_slice %425 {offsets = [3, 0], sizes = [1, 256], strides = [1, 1]} : vector<8x256xf32> to vector<1x256xf32>
    %448 = vector.broadcast %446 : vector<8x1xf32> to vector<8x256xf32>
    %449 = vector.broadcast %447 : vector<1x256xf32> to vector<8x256xf32>
    %450 = arith.mulf %448, %449 : vector<8x256xf32>
    %451 = arith.addf %421, %450 : vector<8x256xf32>
    %452 = vector.extract_strided_slice %427 {offsets = [0, 4], sizes = [8, 1], strides = [1, 1]} : vector<8x8xf32> to vector<8x1xf32>
    %453 = vector.extract_strided_slice %425 {offsets = [4, 0], sizes = [1, 256], strides = [1, 1]} : vector<8x256xf32> to vector<1x256xf32>
    %454 = vector.broadcast %452 : vector<8x1xf32> to vector<8x256xf32>
    %455 = vector.broadcast %453 : vector<1x256xf32> to vector<8x256xf32>
    %456 = arith.mulf %454, %455 : vector<8x256xf32>
    %457 = arith.addf %433, %456 : vector<8x256xf32>
    %458 = vector.extract_strided_slice %427 {offsets = [0, 5], sizes = [8, 1], strides = [1, 1]} : vector<8x8xf32> to vector<8x1xf32>
    %459 = vector.extract_strided_slice %425 {offsets = [5, 0], sizes = [1, 256], strides = [1, 1]} : vector<8x256xf32> to vector<1x256xf32>
    %460 = vector.broadcast %458 : vector<8x1xf32> to vector<8x256xf32>
    %461 = vector.broadcast %459 : vector<1x256xf32> to vector<8x256xf32>
    %462 = arith.mulf %460, %461 : vector<8x256xf32>
    %463 = arith.addf %439, %462 : vector<8x256xf32>
    %464 = vector.extract_strided_slice %427 {offsets = [0, 6], sizes = [8, 1], strides = [1, 1]} : vector<8x8xf32> to vector<8x1xf32>
    %465 = vector.extract_strided_slice %425 {offsets = [6, 0], sizes = [1, 256], strides = [1, 1]} : vector<8x256xf32> to vector<1x256xf32>
    %466 = vector.broadcast %464 : vector<8x1xf32> to vector<8x256xf32>
    %467 = vector.broadcast %465 : vector<1x256xf32> to vector<8x256xf32>
    %468 = arith.mulf %466, %467 : vector<8x256xf32>
    %469 = arith.addf %445, %468 : vector<8x256xf32>
    %470 = vector.extract_strided_slice %427 {offsets = [0, 7], sizes = [8, 1], strides = [1, 1]} : vector<8x8xf32> to vector<8x1xf32>
    %471 = vector.extract_strided_slice %425 {offsets = [7, 0], sizes = [1, 256], strides = [1, 1]} : vector<8x256xf32> to vector<1x256xf32>
    %472 = vector.broadcast %470 : vector<8x1xf32> to vector<8x256xf32>
    %473 = vector.broadcast %471 : vector<1x256xf32> to vector<8x256xf32>
    %474 = arith.mulf %472, %473 : vector<8x256xf32>
    %475 = arith.addf %451, %474 : vector<8x256xf32>
    %c240_i32 = arith.constant 240 : i32
    %476 = tpu.dynamic_rotate %105 by %c240_i32 dim 1 : vector<8x256xf32>, i32 -> vector<8x256xf32>
    %c7 = arith.constant 7 : index
    %c0_40 = arith.constant 0 : index
    %c0_41 = arith.constant 0 : index
    %477 = vector.load %arg12[%c7, %c0_40, %c0_41] : memref<9x8x256xf32, #tpu.memory_space<vmem>>, vector<1x8x256xf32>
    %478 = vector.shape_cast %477 : vector<1x8x256xf32> to vector<8x256xf32>
    %479 = arith.mulf %476, %478 : vector<8x256xf32>
    %480 = vector.extract_strided_slice %10 {offsets = [7, 0, 0], sizes = [1, 8, 8], strides = [1, 1, 1]} : vector<9x8x8xf32> to vector<1x8x8xf32>
    %481 = vector.shape_cast %480 : vector<1x8x8xf32> to vector<8x8xf32>
    %482 = vector.extract_strided_slice %481 {offsets = [0, 0], sizes = [8, 1], strides = [1, 1]} : vector<8x8xf32> to vector<8x1xf32>
    %483 = vector.extract_strided_slice %479 {offsets = [0, 0], sizes = [1, 256], strides = [1, 1]} : vector<8x256xf32> to vector<1x256xf32>
    %484 = vector.broadcast %482 : vector<8x1xf32> to vector<8x256xf32>
    %485 = vector.broadcast %483 : vector<1x256xf32> to vector<8x256xf32>
    %486 = arith.mulf %484, %485 : vector<8x256xf32>
    %487 = arith.addf %457, %486 : vector<8x256xf32>
    %488 = vector.extract_strided_slice %481 {offsets = [0, 1], sizes = [8, 1], strides = [1, 1]} : vector<8x8xf32> to vector<8x1xf32>
    %489 = vector.extract_strided_slice %479 {offsets = [1, 0], sizes = [1, 256], strides = [1, 1]} : vector<8x256xf32> to vector<1x256xf32>
    %490 = vector.broadcast %488 : vector<8x1xf32> to vector<8x256xf32>
    %491 = vector.broadcast %489 : vector<1x256xf32> to vector<8x256xf32>
    %492 = arith.mulf %490, %491 : vector<8x256xf32>
    %493 = arith.addf %463, %492 : vector<8x256xf32>
    %494 = vector.extract_strided_slice %481 {offsets = [0, 2], sizes = [8, 1], strides = [1, 1]} : vector<8x8xf32> to vector<8x1xf32>
    %495 = vector.extract_strided_slice %479 {offsets = [2, 0], sizes = [1, 256], strides = [1, 1]} : vector<8x256xf32> to vector<1x256xf32>
    %496 = vector.broadcast %494 : vector<8x1xf32> to vector<8x256xf32>
    %497 = vector.broadcast %495 : vector<1x256xf32> to vector<8x256xf32>
    %498 = arith.mulf %496, %497 : vector<8x256xf32>
    %499 = arith.addf %469, %498 : vector<8x256xf32>
    %500 = vector.extract_strided_slice %481 {offsets = [0, 3], sizes = [8, 1], strides = [1, 1]} : vector<8x8xf32> to vector<8x1xf32>
    %501 = vector.extract_strided_slice %479 {offsets = [3, 0], sizes = [1, 256], strides = [1, 1]} : vector<8x256xf32> to vector<1x256xf32>
    %502 = vector.broadcast %500 : vector<8x1xf32> to vector<8x256xf32>
    %503 = vector.broadcast %501 : vector<1x256xf32> to vector<8x256xf32>
    %504 = arith.mulf %502, %503 : vector<8x256xf32>
    %505 = arith.addf %475, %504 : vector<8x256xf32>
    %506 = vector.extract_strided_slice %481 {offsets = [0, 4], sizes = [8, 1], strides = [1, 1]} : vector<8x8xf32> to vector<8x1xf32>
    %507 = vector.extract_strided_slice %479 {offsets = [4, 0], sizes = [1, 256], strides = [1, 1]} : vector<8x256xf32> to vector<1x256xf32>
    %508 = vector.broadcast %506 : vector<8x1xf32> to vector<8x256xf32>
    %509 = vector.broadcast %507 : vector<1x256xf32> to vector<8x256xf32>
    %510 = arith.mulf %508, %509 : vector<8x256xf32>
    %511 = arith.addf %487, %510 : vector<8x256xf32>
    %512 = vector.extract_strided_slice %481 {offsets = [0, 5], sizes = [8, 1], strides = [1, 1]} : vector<8x8xf32> to vector<8x1xf32>
    %513 = vector.extract_strided_slice %479 {offsets = [5, 0], sizes = [1, 256], strides = [1, 1]} : vector<8x256xf32> to vector<1x256xf32>
    %514 = vector.broadcast %512 : vector<8x1xf32> to vector<8x256xf32>
    %515 = vector.broadcast %513 : vector<1x256xf32> to vector<8x256xf32>
    %516 = arith.mulf %514, %515 : vector<8x256xf32>
    %517 = arith.addf %493, %516 : vector<8x256xf32>
    %518 = vector.extract_strided_slice %481 {offsets = [0, 6], sizes = [8, 1], strides = [1, 1]} : vector<8x8xf32> to vector<8x1xf32>
    %519 = vector.extract_strided_slice %479 {offsets = [6, 0], sizes = [1, 256], strides = [1, 1]} : vector<8x256xf32> to vector<1x256xf32>
    %520 = vector.broadcast %518 : vector<8x1xf32> to vector<8x256xf32>
    %521 = vector.broadcast %519 : vector<1x256xf32> to vector<8x256xf32>
    %522 = arith.mulf %520, %521 : vector<8x256xf32>
    %523 = arith.addf %499, %522 : vector<8x256xf32>
    %524 = vector.extract_strided_slice %481 {offsets = [0, 7], sizes = [8, 1], strides = [1, 1]} : vector<8x8xf32> to vector<8x1xf32>
    %525 = vector.extract_strided_slice %479 {offsets = [7, 0], sizes = [1, 256], strides = [1, 1]} : vector<8x256xf32> to vector<1x256xf32>
    %526 = vector.broadcast %524 : vector<8x1xf32> to vector<8x256xf32>
    %527 = vector.broadcast %525 : vector<1x256xf32> to vector<8x256xf32>
    %528 = arith.mulf %526, %527 : vector<8x256xf32>
    %529 = arith.addf %505, %528 : vector<8x256xf32>
    %c239_i32 = arith.constant 239 : i32
    %530 = tpu.dynamic_rotate %105 by %c239_i32 dim 1 : vector<8x256xf32>, i32 -> vector<8x256xf32>
    %c8 = arith.constant 8 : index
    %c0_42 = arith.constant 0 : index
    %c0_43 = arith.constant 0 : index
    %531 = vector.load %arg12[%c8, %c0_42, %c0_43] : memref<9x8x256xf32, #tpu.memory_space<vmem>>, vector<1x8x256xf32>
    %532 = vector.shape_cast %531 : vector<1x8x256xf32> to vector<8x256xf32>
    %533 = arith.mulf %530, %532 : vector<8x256xf32>
    %534 = vector.extract_strided_slice %10 {offsets = [8, 0, 0], sizes = [1, 8, 8], strides = [1, 1, 1]} : vector<9x8x8xf32> to vector<1x8x8xf32>
    %535 = vector.shape_cast %534 : vector<1x8x8xf32> to vector<8x8xf32>
    %536 = vector.extract_strided_slice %535 {offsets = [0, 0], sizes = [8, 1], strides = [1, 1]} : vector<8x8xf32> to vector<8x1xf32>
    %537 = vector.extract_strided_slice %533 {offsets = [0, 0], sizes = [1, 256], strides = [1, 1]} : vector<8x256xf32> to vector<1x256xf32>
    %538 = vector.broadcast %536 : vector<8x1xf32> to vector<8x256xf32>
    %539 = vector.broadcast %537 : vector<1x256xf32> to vector<8x256xf32>
    %540 = arith.mulf %538, %539 : vector<8x256xf32>
    %541 = arith.addf %511, %540 : vector<8x256xf32>
    %542 = vector.extract_strided_slice %535 {offsets = [0, 1], sizes = [8, 1], strides = [1, 1]} : vector<8x8xf32> to vector<8x1xf32>
    %543 = vector.extract_strided_slice %533 {offsets = [1, 0], sizes = [1, 256], strides = [1, 1]} : vector<8x256xf32> to vector<1x256xf32>
    %544 = vector.broadcast %542 : vector<8x1xf32> to vector<8x256xf32>
    %545 = vector.broadcast %543 : vector<1x256xf32> to vector<8x256xf32>
    %546 = arith.mulf %544, %545 : vector<8x256xf32>
    %547 = arith.addf %517, %546 : vector<8x256xf32>
    %548 = vector.extract_strided_slice %535 {offsets = [0, 2], sizes = [8, 1], strides = [1, 1]} : vector<8x8xf32> to vector<8x1xf32>
    %549 = vector.extract_strided_slice %533 {offsets = [2, 0], sizes = [1, 256], strides = [1, 1]} : vector<8x256xf32> to vector<1x256xf32>
    %550 = vector.broadcast %548 : vector<8x1xf32> to vector<8x256xf32>
    %551 = vector.broadcast %549 : vector<1x256xf32> to vector<8x256xf32>
    %552 = arith.mulf %550, %551 : vector<8x256xf32>
    %553 = arith.addf %523, %552 : vector<8x256xf32>
    %554 = vector.extract_strided_slice %535 {offsets = [0, 3], sizes = [8, 1], strides = [1, 1]} : vector<8x8xf32> to vector<8x1xf32>
    %555 = vector.extract_strided_slice %533 {offsets = [3, 0], sizes = [1, 256], strides = [1, 1]} : vector<8x256xf32> to vector<1x256xf32>
    %556 = vector.broadcast %554 : vector<8x1xf32> to vector<8x256xf32>
    %557 = vector.broadcast %555 : vector<1x256xf32> to vector<8x256xf32>
    %558 = arith.mulf %556, %557 : vector<8x256xf32>
    %559 = arith.addf %529, %558 : vector<8x256xf32>
    %560 = vector.extract_strided_slice %535 {offsets = [0, 4], sizes = [8, 1], strides = [1, 1]} : vector<8x8xf32> to vector<8x1xf32>
    %561 = vector.extract_strided_slice %533 {offsets = [4, 0], sizes = [1, 256], strides = [1, 1]} : vector<8x256xf32> to vector<1x256xf32>
    %562 = vector.broadcast %560 : vector<8x1xf32> to vector<8x256xf32>
    %563 = vector.broadcast %561 : vector<1x256xf32> to vector<8x256xf32>
    %564 = arith.mulf %562, %563 : vector<8x256xf32>
    %565 = arith.addf %541, %564 : vector<8x256xf32>
    %566 = vector.extract_strided_slice %535 {offsets = [0, 5], sizes = [8, 1], strides = [1, 1]} : vector<8x8xf32> to vector<8x1xf32>
    %567 = vector.extract_strided_slice %533 {offsets = [5, 0], sizes = [1, 256], strides = [1, 1]} : vector<8x256xf32> to vector<1x256xf32>
    %568 = vector.broadcast %566 : vector<8x1xf32> to vector<8x256xf32>
    %569 = vector.broadcast %567 : vector<1x256xf32> to vector<8x256xf32>
    %570 = arith.mulf %568, %569 : vector<8x256xf32>
    %571 = arith.addf %547, %570 : vector<8x256xf32>
    %572 = vector.extract_strided_slice %535 {offsets = [0, 6], sizes = [8, 1], strides = [1, 1]} : vector<8x8xf32> to vector<8x1xf32>
    %573 = vector.extract_strided_slice %533 {offsets = [6, 0], sizes = [1, 256], strides = [1, 1]} : vector<8x256xf32> to vector<1x256xf32>
    %574 = vector.broadcast %572 : vector<8x1xf32> to vector<8x256xf32>
    %575 = vector.broadcast %573 : vector<1x256xf32> to vector<8x256xf32>
    %576 = arith.mulf %574, %575 : vector<8x256xf32>
    %577 = arith.addf %553, %576 : vector<8x256xf32>
    %578 = vector.extract_strided_slice %535 {offsets = [0, 7], sizes = [8, 1], strides = [1, 1]} : vector<8x8xf32> to vector<8x1xf32>
    %579 = vector.extract_strided_slice %533 {offsets = [7, 0], sizes = [1, 256], strides = [1, 1]} : vector<8x256xf32> to vector<1x256xf32>
    %580 = vector.broadcast %578 : vector<8x1xf32> to vector<8x256xf32>
    %581 = vector.broadcast %579 : vector<1x256xf32> to vector<8x256xf32>
    %582 = arith.mulf %580, %581 : vector<8x256xf32>
    %583 = arith.addf %559, %582 : vector<8x256xf32>
    %584 = arith.addf %565, %571 : vector<8x256xf32>
    %585 = arith.addf %577, %583 : vector<8x256xf32>
    %586 = arith.addf %584, %585 : vector<8x256xf32>
    %587 = vector.broadcast %5 : vector<8x1xf32> to vector<8x256xf32>
    %588 = arith.mulf %586, %587 : vector<8x256xf32>
    %589 = vector.broadcast %6 : vector<8x1xf32> to vector<8x256xf32>
    %590 = arith.addf %588, %589 : vector<8x256xf32>
    %cst_44 = arith.constant 0.000000e+00 : f32
    %591 = vector.broadcast %cst_44 : f32 to vector<8x256xf32>
    %592 = arith.maximumf %590, %591 : vector<8x256xf32>
    %c0_45 = arith.constant 0 : index
    %c0_46 = arith.constant 0 : index
    %593 = vector.load %arg13[%c0_45, %c0_46] : memref<8x256xf32, #tpu.memory_space<vmem>>, vector<8x256xf32>
    tpu.vector_store %arg13[%c0_45, %c0_46], %592 {strides = array<i32>} : memref<8x256xf32, #tpu.memory_space<vmem>>, vector<8x256xf32>,
    return
  }
  func.func @transform_0(%arg0: i32) -> (i32, i32) {
    %c0_i32 = arith.constant 0 : i32
    %c0_i32_0 = arith.constant 0 : i32
    return %arg0, %c0_i32 : i32, i32
  }
  func.func @transform_1(%arg0: i32) -> (i32, i32) {
    %c0_i32 = arith.constant 0 : i32
    %c0_i32_0 = arith.constant 0 : i32
    %c0_i32_1 = arith.constant 0 : i32
    return %c0_i32, %c0_i32_0 : i32, i32
  }
  func.func @transform_2(%arg0: i32) -> (i32, i32) {
    %c0_i32 = arith.constant 0 : i32
    %c0_i32_0 = arith.constant 0 : i32
    %c0_i32_1 = arith.constant 0 : i32
    return %c0_i32, %c0_i32_0 : i32, i32
  }
  func.func @transform_3(%arg0: i32) -> (i32, i32) {
    %c0_i32 = arith.constant 0 : i32
    %c0_i32_0 = arith.constant 0 : i32
    %c0_i32_1 = arith.constant 0 : i32
    return %c0_i32, %c0_i32_0 : i32, i32
  }
  func.func @transform_4(%arg0: i32) -> (i32, i32) {
    %c0_i32 = arith.constant 0 : i32
    %c0_i32_0 = arith.constant 0 : i32
    %c0_i32_1 = arith.constant 0 : i32
    return %c0_i32, %c0_i32_0 : i32, i32
  }
  func.func @transform_5(%arg0: i32) -> (i32, i32) {
    %c0_i32 = arith.constant 0 : i32
    %c0_i32_0 = arith.constant 0 : i32
    %c0_i32_1 = arith.constant 0 : i32
    return %c0_i32, %c0_i32_0 : i32, i32
  }
  func.func @transform_6(%arg0: i32) -> (i32, i32) {
    %c0_i32 = arith.constant 0 : i32
    %c0_i32_0 = arith.constant 0 : i32
    %c0_i32_1 = arith.constant 0 : i32
    return %c0_i32, %c0_i32_0 : i32, i32
  }
  func.func @transform_7(%arg0: i32) -> (i32, i32) {
    %c0_i32 = arith.constant 0 : i32
    %c0_i32_0 = arith.constant 0 : i32
    %c0_i32_1 = arith.constant 0 : i32
    return %c0_i32, %c0_i32_0 : i32, i32
  }
  func.func @transform_8(%arg0: i32) -> (i32, i32, i32) {
    %c0_i32 = arith.constant 0 : i32
    %c0_i32_0 = arith.constant 0 : i32
    %c0_i32_1 = arith.constant 0 : i32
    %c0_i32_2 = arith.constant 0 : i32
    return %c0_i32, %c0_i32_0, %c0_i32_1 : i32, i32, i32
  }
  func.func @transform_9(%arg0: i32) -> (i32, i32) {
    %c0_i32 = arith.constant 0 : i32
    %c0_i32_0 = arith.constant 0 : i32
    %c0_i32_1 = arith.constant 0 : i32
    return %c0_i32, %c0_i32_0 : i32, i32
  }
  func.func @transform_10(%arg0: i32) -> (i32, i32) {
    %c0_i32 = arith.constant 0 : i32
    %c0_i32_0 = arith.constant 0 : i32
    %c0_i32_1 = arith.constant 0 : i32
    return %c0_i32, %c0_i32_0 : i32, i32
  }
  func.func @transform_11(%arg0: i32) -> (i32, i32, i32) {
    %c0_i32 = arith.constant 0 : i32
    %c0_i32_0 = arith.constant 0 : i32
    %c0_i32_1 = arith.constant 0 : i32
    %c0_i32_2 = arith.constant 0 : i32
    return %c0_i32, %c0_i32_0, %c0_i32_1 : i32, i32, i32
  }
  func.func @transform_12(%arg0: i32) -> (i32, i32) {
    %c0_i32 = arith.constant 0 : i32
    %c0_i32_0 = arith.constant 0 : i32
    return %arg0, %c0_i32 : i32, i32
  }
  func.func @transform_13(%arg0: i32) -> (i32, i32, i32) {
    %c0_i32 = arith.constant 0 : i32
    %c0_i32_0 = arith.constant 0 : i32
    %c0_i32_1 = arith.constant 0 : i32
    return %arg0, %c0_i32, %c0_i32_0 : i32, i32, i32
  }
}

</mosaic_0001>

<llo_original>
// kernel: tpu_custom_call.1
$region0: #{tpu_custom_call.1}
  #allocation0 [shape = 'u32[]', space=smem, size = 0x4, offset = 0x4, fixed_abs, tag = 'smem constant byte address 0x4 - core index']
  #allocation1 [shape = 'u32[144,128]{1,0:T(1,128)}', space=vmem, size = 0x12000, scoped, tag = 'internal scratch']
  %s0 = inlined_call_operand.vmem [shape: f32[8,256], index: 0, kind: input, shape index: {}]
  %s1 = inlined_call_operand.vmem [shape: f32[8,1], index: 1, kind: input, shape index: {}]
  %s2 = inlined_call_operand.vmem [shape: f32[8,1], index: 2, kind: input, shape index: {}]
  %s3 = inlined_call_operand.vmem [shape: f32[8,8], index: 3, kind: input, shape index: {}]
  %s4 = inlined_call_operand.vmem [shape: f32[8,1], index: 4, kind: input, shape index: {}]
  %s5 = inlined_call_operand.vmem [shape: f32[8,1], index: 5, kind: input, shape index: {}]
  %s6 = inlined_call_operand.vmem [shape: f32[16,4], index: 6, kind: input, shape index: {}]
  %s7 = inlined_call_operand.vmem [shape: f32[16,1], index: 7, kind: input, shape index: {}]
  %s8 = inlined_call_operand.vmem [shape: f32[9,8,8], index: 8, kind: input, shape index: {}]
  %s9 = inlined_call_operand.vmem [shape: f32[8,1], index: 9, kind: input, shape index: {}]
  %s10 = inlined_call_operand.vmem [shape: f32[8,1], index: 10, kind: input, shape index: {}]
  %s11 = inlined_call_operand.vmem [shape: f32[9,8,256], index: 11, kind: input, shape index: {}]
  %s12 = inlined_call_operand.hbm [shape: f32[8,256], index: 12, kind: output, shape index: {0}]
  %s13 = inlined_call_operand.vmem [shape: f32[1,16,2], index: 13, kind: output, shape index: {1}]
  %14 = xla_tuple %s12, %s13
  %s15 = sld [smem:[#allocation0]]
  $region66: #{tpu_custom_call.1} parent=0
    _
  %s17 = ssub.s32 1, %s15
  %s18 = scalar_select 0, %s17, %s15
  $region1: #{tpu_custom_call.1} parent=0
    #allocation2 [shape = 'u8[8192]{0}', space=vmem, size = 0x2000, scoped, tag = 'output window, operand 0, single buffered']
    #allocation3 [shape = 's32[1]{0}', space=sflag, size = 0x4, scoped, tag = 'scoped memory for tpu_custom_call.1']
    %19 = vsyncpa [#allocation3], 0
    // Predicated region
    $region2: #{tpu_custom_call.1} parent=1 // pred_check
      _
    $region3: #{tpu_custom_call.1} parent=1 // pred_check_branch
      %21 = sbr.rel (0) target = $region5
    $region4: #{tpu_custom_call.1} parent=1 // pred_region
      _
    $region5: #{tpu_custom_call.1} parent=1 // pred_fallthru
      _
    // Predicated region
    $region6: #{tpu_custom_call.1} parent=1 // pred_check
      _
    $region7: #{tpu_custom_call.1} parent=1 // pred_check_branch
      %23 = sbr.rel (0) target = $region9
    $region8: #{tpu_custom_call.1} parent=1 // pred_region
      _
    $region9: #{tpu_custom_call.1} parent=1 // pred_fallthru
      _
    // Predicated region
    $region10: #{tpu_custom_call.1} parent=1 // pred_check
      _
    $region11: #{tpu_custom_call.1} parent=1 // pred_check_branch
      %25 = sbr.rel (0) target = $region13
    $region12: #{tpu_custom_call.1} parent=1 // pred_region
      _
    $region13: #{tpu_custom_call.1} parent=1 // pred_fallthru
      _
    // Predicated region
    $region14: #{tpu_custom_call.1} parent=1 // pred_check
      _
    $region15: #{tpu_custom_call.1} parent=1 // pred_check_branch
      %27 = sbr.rel (0) target = $region17
    $region16: #{tpu_custom_call.1} parent=1 // pred_region
      _
    $region17: #{tpu_custom_call.1} parent=1 // pred_fallthru
      _
    // Predicated region
    $region18: #{tpu_custom_call.1} parent=1 // pred_check
      _
    $region19: #{tpu_custom_call.1} parent=1 // pred_check_branch
      %29 = sbr.rel (0) target = $region21
    $region20: #{tpu_custom_call.1} parent=1 // pred_region
      _
    $region21: #{tpu_custom_call.1} parent=1 // pred_fallthru
      _
    // Predicated region
    $region22: #{tpu_custom_call.1} parent=1 // pred_check
      _
    $region23: #{tpu_custom_call.1} parent=1 // pred_check_branch
      %31 = sbr.rel (0) target = $region25
    $region24: #{tpu_custom_call.1} parent=1 // pred_region
      _
    $region25: #{tpu_custom_call.1} parent=1 // pred_fallthru
      _
    // Predicated region
    $region26: #{tpu_custom_call.1} parent=1 // pred_check
      _
    $region27: #{tpu_custom_call.1} parent=1 // pred_check_branch
      %33 = sbr.rel (0) target = $region29
    $region28: #{tpu_custom_call.1} parent=1 // pred_region
      _
    $region29: #{tpu_custom_call.1} parent=1 // pred_fallthru
      _
    // Predicated region
    $region30: #{tpu_custom_call.1} parent=1 // pred_check
      _
    $region31: #{tpu_custom_call.1} parent=1 // pred_check_branch
      %35 = sbr.rel (0) target = $region33
    $region32: #{tpu_custom_call.1} parent=1 // pred_region
      _
    $region33: #{tpu_custom_call.1} parent=1 // pred_fallthru
      _
    // Predicated region
    $region34: #{tpu_custom_call.1} parent=1 // pred_check
      _
    $region35: #{tpu_custom_call.1} parent=1 // pred_check_branch
      %37 = sbr.rel (0) target = $region37
    $region36: #{tpu_custom_call.1} parent=1 // pred_region
      _
    $region37: #{tpu_custom_call.1} parent=1 // pred_fallthru
      _
    // Predicated region
    $region38: #{tpu_custom_call.1} parent=1 // pred_check
      _
    $region39: #{tpu_custom_call.1} parent=1 // pred_check_branch
      %39 = sbr.rel (0) target = $region41
    $region40: #{tpu_custom_call.1} parent=1 // pred_region
      _
    $region41: #{tpu_custom_call.1} parent=1 // pred_fallthru
      _
    // Predicated region
    $region42: #{tpu_custom_call.1} parent=1 // pred_check
      _
    $region43: #{tpu_custom_call.1} parent=1 // pred_check_branch
      %41 = sbr.rel (0) target = $region45
    $region44: #{tpu_custom_call.1} parent=1 // pred_region
      _
    $region45: #{tpu_custom_call.1} parent=1 // pred_fallthru
      _
    // Predicated region
    $region46: #{tpu_custom_call.1} parent=1 // pred_check
      _
    $region47: #{tpu_custom_call.1} parent=1 // pred_check_branch
      %43 = sbr.rel (0) target = $region49
    $region48: #{tpu_custom_call.1} parent=1 // pred_region
      _
    $region49: #{tpu_custom_call.1} parent=1 // pred_fallthru
      _
    %v44 = vld [vmem:[%s0] sm:$0xff]
    %v45 = vld [vmem:[%s0 + $0x8] sm:$0xff]
    %v46 = vld [vmem:[%s1] sm:$0xff]
    %v47 = vld [vmem:[%s2] sm:$0xff]
    %v48 = vld [vmem:[%s4] sm:$0xff]
    %v49 = vld [vmem:[%s5] sm:$0xff]
    %v50 = vld [vmem:[%s9] sm:$0xff]
    %v51 = vld [vmem:[%s10] sm:$0xff]
    %v52 = vld [vmem:[%s3] sm:$0xff]
    %v53 = vld [vmem:[%s6] sm:$0xff]
    %v54 = vld [vmem:[%s6 + $0x8] sm:$0xff]
    %v55 = vld [vmem:[%s7] sm:$0xff]
    %v56 = vld [vmem:[%s7 + $0x8] sm:$0xff]
    %v57 = vld [vmem:[%s8] sm:$0xff]
    %v58 = vld [vmem:[%s8 + $0x8] sm:$0xff]
    %v59 = vld [vmem:[%s8 + $0x10] sm:$0xff]
    %v60 = vld [vmem:[%s8 + $0x18] sm:$0xff]
    %v61 = vld [vmem:[%s8 + $0x20] sm:$0xff]
    %v62 = vld [vmem:[%s8 + $0x28] sm:$0xff]
    %v63 = vld [vmem:[%s8 + $0x30] sm:$0xff]
    %v64 = vld [vmem:[%s8 + $0x38] sm:$0xff]
    %v65 = vld [vmem:[%s8 + $0x40] sm:$0xff]
    %v66 = vadd.f32 %v44, %v45
    %67 = vadd.xlane.f32.xlu0 %v66
    %v68 = vpop.xlane.xlu0 %67
    %v69 = vmul.f32 %v68, 0.00390625
    %v70 = vmul.f32 %v69, %v46
    %v71 = vadd.f32 %v70, %v47
    %v72 = vlaneseq
    %v73 = vshrl.u32 %v72, 7
    %v74 = vsub.s32 0, %v73
    %v75 = vrot.slane %v71, %v74
    %v76 = vmul.f32 %v52, %v75
    %v77 = vlaneseq
    %v78 = vshrl.u32 %v77, 7
    %v79 = vsub.s32 1, %v78
    %v80 = vrot.slane %v71, %v79
    %82 = vrot.lane.b32.xlu0 %v80, 1
    %v83 = vpop.permute.xlu0 %82
    %v85 = vmul.f32 %v52, %v83
    %87 = vrot.lane.b32.xlu0 %v85, 127
    %v88 = vpop.permute.xlu0 %87
    %v90 = vadd.f32 %v76, %v88
    %v91 = vlaneseq
    %v92 = vshrl.u32 %v91, 7
    %v93 = vsub.s32 2, %v92
    %v94 = vrot.slane %v71, %v93
    %96 = vrot.lane.b32.xlu0 %v94, 2
    %v97 = vpop.permute.xlu0 %96
    %v99 = vmul.f32 %v52, %v97
    %101 = vrot.lane.b32.xlu0 %v99, 126
    %v102 = vpop.permute.xlu0 %101
    %v104 = vadd.f32 %v90, %v102
    %v105 = vlaneseq
    %v106 = vshrl.u32 %v105, 7
    %v107 = vsub.s32 3, %v106
    %v108 = vrot.slane %v71, %v107
    %110 = vrot.lane.b32.xlu0 %v108, 3
    %v111 = vpop.permute.xlu0 %110
    %v113 = vmul.f32 %v52, %v111
    %115 = vrot.lane.b32.xlu0 %v113, 125
    %v116 = vpop.permute.xlu0 %115
    %v118 = vadd.f32 %v104, %v116
    %v119 = vlaneseq
    %v120 = vshrl.u32 %v119, 7
    %v121 = vsub.s32 4, %v120
    %v122 = vrot.slane %v71, %v121
    %124 = vrot.lane.b32.xlu0 %v122, 4
    %v125 = vpop.permute.xlu0 %124
    %v127 = vmul.f32 %v52, %v125
    %129 = vrot.lane.b32.xlu0 %v127, 124
    %v130 = vpop.permute.xlu0 %129
    %v132 = vadd.f32 %v118, %v130
    %v133 = vlaneseq
    %v134 = vshrl.u32 %v133, 7
    %v135 = vsub.s32 5, %v134
    %v136 = vrot.slane %v71, %v135
    %138 = vrot.lane.b32.xlu0 %v136, 5
    %v139 = vpop.permute.xlu0 %138
    %v141 = vmul.f32 %v52, %v139
    %143 = vrot.lane.b32.xlu0 %v141, 123
    %v144 = vpop.permute.xlu0 %143
    %v146 = vadd.f32 %v132, %v144
    %v147 = vlaneseq
    %v148 = vshrl.u32 %v147, 7
    %v149 = vsub.s32 6, %v148
    %v150 = vrot.slane %v71, %v149
    %152 = vrot.lane.b32.xlu0 %v150, 6
    %v153 = vpop.permute.xlu0 %152
    %v155 = vmul.f32 %v52, %v153
    %157 = vrot.lane.b32.xlu0 %v155, 122
    %v158 = vpop.permute.xlu0 %157
    %v160 = vadd.f32 %v146, %v158
    %v161 = vlaneseq
    %v162 = vshrl.u32 %v161, 7
    %v163 = vsub.s32 7, %v162
    %v164 = vrot.slane %v71, %v163
    %166 = vrot.lane.b32.xlu0 %v164, 7
    %v167 = vpop.permute.xlu0 %166
    %v169 = vmul.f32 %v52, %v167
    %171 = vrot.lane.b32.xlu0 %v169, 121
    %v172 = vpop.permute.xlu0 %171
    %v174 = vadd.f32 %v160, %v172
    %v175 = vmul.f32 %v174, %v48
    %v176 = vadd.f32 %v175, %v49
    %v177 = vmax.f32 %v176, 0.0
    %v178 = vlaneseq
    %v179 = vshrl.u32 %v178, 7
    %v180 = vsub.s32 0, %v179
    %v181 = vrot.slane %v177, %v180
    %v182 = vmul.f32 %v53, %v181
    %v183 = vmul.f32 %v54, %v181
    %v184 = vadd.f32 %v55, %v182
    %v185 = vadd.f32 %v56, %v183
    %v186 = vlaneseq
    %v187 = vshrl.u32 %v186, 7
    %v188 = vsub.s32 1, %v187
    %v189 = vrot.slane %v177, %v188
    %191 = vrot.lane.b32.xlu0 %v189, 1
    %v192 = vpop.permute.xlu0 %191
    %v194 = vmul.f32 %v53, %v192
    %v195 = vmul.f32 %v54, %v192
    %198 = vrot.lane.b32.xlu0 %v194, 127
    %v199 = vpop.permute.xlu0 %198
    %200 = vrot.lane.b32.xlu0 %v195, 127
    %v201 = vpop.permute.xlu0 %200
    %v204 = vadd.f32 %v184, %v199
    %v205 = vadd.f32 %v185, %v201
    %v206 = vlaneseq
    %v207 = vshrl.u32 %v206, 7
    %v208 = vsub.s32 2, %v207
    %v209 = vrot.slane %v177, %v208
    %211 = vrot.lane.b32.xlu0 %v209, 2
    %v212 = vpop.permute.xlu0 %211
    %v214 = vmul.f32 %v53, %v212
    %v215 = vmul.f32 %v54, %v212
    %218 = vrot.lane.b32.xlu0 %v214, 126
    %v219 = vpop.permute.xlu0 %218
    %220 = vrot.lane.b32.xlu0 %v215, 126
    %v221 = vpop.permute.xlu0 %220
    %v224 = vadd.f32 %v204, %v219
    %v225 = vadd.f32 %v205, %v221
    %v226 = vlaneseq
    %v227 = vshrl.u32 %v226, 7
    %v228 = vsub.s32 3, %v227
    %v229 = vrot.slane %v177, %v228
    %231 = vrot.lane.b32.xlu0 %v229, 3
    %v232 = vpop.permute.xlu0 %231
    %v234 = vmul.f32 %v53, %v232
    %v235 = vmul.f32 %v54, %v232
    %238 = vrot.lane.b32.xlu0 %v234, 125
    %v239 = vpop.permute.xlu0 %238
    %240 = vrot.lane.b32.xlu0 %v235, 125
    %v241 = vpop.permute.xlu0 %240
    %v244 = vadd.f32 %v224, %v239
    %v245 = vadd.f32 %v225, %v241
    %v246 = vlaneseq
    %v247 = vshrl.u32 %v246, 7
    %v248 = vsub.s32 4, %v247
    %v249 = vrot.slane %v177, %v248
    %v250 = vmul.f32 %v53, %v249
    %v251 = vmul.f32 %v54, %v249
    %v252 = vadd.f32 %v55, %v250
    %v253 = vadd.f32 %v56, %v251
    %v254 = vlaneseq
    %v255 = vshrl.u32 %v254, 7
    %v256 = vsub.s32 5, %v255
    %v257 = vrot.slane %v177, %v256
    %259 = vrot.lane.b32.xlu0 %v257, 1
    %v260 = vpop.permute.xlu0 %259
    %v262 = vmul.f32 %v53, %v260
    %v263 = vmul.f32 %v54, %v260
    %266 = vrot.lane.b32.xlu0 %v262, 127
    %v267 = vpop.permute.xlu0 %266
    %268 = vrot.lane.b32.xlu0 %v263, 127
    %v269 = vpop.permute.xlu0 %268
    %v272 = vadd.f32 %v252, %v267
    %v273 = vadd.f32 %v253, %v269
    %v274 = vlaneseq
    %v275 = vshrl.u32 %v274, 7
    %v276 = vsub.s32 6, %v275
    %v277 = vrot.slane %v177, %v276
    %279 = vrot.lane.b32.xlu0 %v277, 2
    %v280 = vpop.permute.xlu0 %279
    %v282 = vmul.f32 %v53, %v280
    %v283 = vmul.f32 %v54, %v280
    %286 = vrot.lane.b32.xlu0 %v282, 126
    %v287 = vpop.permute.xlu0 %286
    %288 = vrot.lane.b32.xlu0 %v283, 126
    %v289 = vpop.permute.xlu0 %288
    %v292 = vadd.f32 %v272, %v287
    %v293 = vadd.f32 %v273, %v289
    %v294 = vlaneseq
    %v295 = vshrl.u32 %v294, 7
    %v296 = vsub.s32 7, %v295
    %v297 = vrot.slane %v177, %v296
    %299 = vrot.lane.b32.xlu0 %v297, 3
    %v300 = vpop.permute.xlu0 %299
    %v302 = vmul.f32 %v53, %v300
    %v303 = vmul.f32 %v54, %v300
    %306 = vrot.lane.b32.xlu0 %v302, 125
    %v307 = vpop.permute.xlu0 %306
    %308 = vrot.lane.b32.xlu0 %v303, 125
    %v309 = vpop.permute.xlu0 %308
    %v312 = vadd.f32 %v292, %v307
    %v313 = vadd.f32 %v293, %v309
    %316 = vrot.lane.b32.xlu0 %v312, 1
    %v317 = vpop.permute.xlu0 %316
    %318 = vrot.lane.b32.xlu0 %v313, 1
    %v319 = vpop.permute.xlu0 %318
    %vm322 = vcmask 7168
    %v323 = vsel %vm322, %v244, %v317
    %v324 = vsel %vm322, %v245, %v319
    %vm325 = vcmask 15360
    %326 = vst.msk [vmem:[%s13] sm:$0xff] %vm325, %v323
    %327 = vst.msk [vmem:[%s13 + $0x8] sm:$0xff] %vm325, %v324
    %329 = vset.pattern.permute.xlu0 0
    %330 = vperm.xlu0 %329, %v177
    %v331 = vpop.permute.xlu0 %330
    %v333 = vadd.f32 %v44, %v331
    %v334 = vadd.f32 %v45, %v331
    %335 = vrot.lane.b32.xlu0 %v333, 17
    %v336 = vpop.permute.xlu0 %335
    %337 = vrot.lane.b32.xlu0 %v334, 17
    %v338 = vpop.permute.xlu0 %337
    %v339 = vlaneseq
    %v340 = vand.u32 %v339, 127
    %vm341 = vcmp.lt.s32.totalorder %v340, 17
    %v342 = vsel %vm341, %v336, %v338
    %v343 = vsel %vm341, %v338, %v336
    %v344 = vld [vmem:[%s11] sm:$0xff]
    %v345 = vld [vmem:[%s11 + $0x8] sm:$0xff]
    %v346 = vmul.f32 %v343, %v344
    %v347 = vmul.f32 %v342, %v345
    %349 = vset.pattern.permute.xlu0 0
    %350 = vperm.xlu0 %349, %v57
    %v351 = vpop.permute.xlu0 %350
    %v353 = vlaneseq
    %v354 = vshrl.u32 %v353, 7
    %v355 = vsub.s32 0, %v354
    %v356 = vrot.slane %v346, %v355
    %v357 = vlaneseq
    %v358 = vshrl.u32 %v357, 7
    %v359 = vsub.s32 0, %v358
    %v360 = vrot.slane %v347, %v359
    %v361 = vmul.f32 %v351, %v356
    %v362 = vmul.f32 %v351, %v360
    %363 = vset.pattern.permute.xlu0 1
    %364 = vperm.xlu0 %363, %v57
    %v365 = vpop.permute.xlu0 %364
    %v367 = vlaneseq
    %v368 = vshrl.u32 %v367, 7
    %v369 = vsub.s32 1, %v368
    %v370 = vrot.slane %v346, %v369
    %v371 = vlaneseq
    %v372 = vshrl.u32 %v371, 7
    %v373 = vsub.s32 1, %v372
    %v374 = vrot.slane %v347, %v373
    %v375 = vmul.f32 %v365, %v370
    %v376 = vmul.f32 %v365, %v374
    %377 = vset.pattern.permute.xlu0 2
    %378 = vperm.xlu0 %377, %v57
    %v379 = vpop.permute.xlu0 %378
    %v381 = vlaneseq
    %v382 = vshrl.u32 %v381, 7
    %v383 = vsub.s32 2, %v382
    %v384 = vrot.slane %v346, %v383
    %v385 = vlaneseq
    %v386 = vshrl.u32 %v385, 7
    %v387 = vsub.s32 2, %v386
    %v388 = vrot.slane %v347, %v387
    %v389 = vmul.f32 %v379, %v384
    %v390 = vmul.f32 %v379, %v388
    %391 = vset.pattern.permute.xlu0 3
    %392 = vperm.xlu0 %391, %v57
    %v393 = vpop.permute.xlu0 %392
    %v395 = vlaneseq
    %v396 = vshrl.u32 %v395, 7
    %v397 = vsub.s32 3, %v396
    %v398 = vrot.slane %v346, %v397
    %v399 = vlaneseq
    %v400 = vshrl.u32 %v399, 7
    %v401 = vsub.s32 3, %v400
    %v402 = vrot.slane %v347, %v401
    %v403 = vmul.f32 %v393, %v398
    %v404 = vmul.f32 %v393, %v402
    %405 = vset.pattern.permute.xlu0 4
    %406 = vperm.xlu0 %405, %v57
    %v407 = vpop.permute.xlu0 %406
    %v409 = vlaneseq
    %v410 = vshrl.u32 %v409, 7
    %v411 = vsub.s32 4, %v410
    %v412 = vrot.slane %v346, %v411
    %v413 = vlaneseq
    %v414 = vshrl.u32 %v413, 7
    %v415 = vsub.s32 4, %v414
    %v416 = vrot.slane %v347, %v415
    %v417 = vmul.f32 %v407, %v412
    %v418 = vmul.f32 %v407, %v416
    %v419 = vadd.f32 %v361, %v417
    %v420 = vadd.f32 %v362, %v418
    %421 = vset.pattern.permute.xlu0 5
    %422 = vperm.xlu0 %421, %v57
    %v423 = vpop.permute.xlu0 %422
    %v425 = vlaneseq
    %v426 = vshrl.u32 %v425, 7
    %v427 = vsub.s32 5, %v426
    %v428 = vrot.slane %v346, %v427
    %v429 = vlaneseq
    %v430 = vshrl.u32 %v429, 7
    %v431 = vsub.s32 5, %v430
    %v432 = vrot.slane %v347, %v431
    %v433 = vmul.f32 %v423, %v428
    %v434 = vmul.f32 %v423, %v432
    %v435 = vadd.f32 %v375, %v433
    %v436 = vadd.f32 %v376, %v434
    %437 = vset.pattern.permute.xlu0 6
    %438 = vperm.xlu0 %437, %v57
    %v439 = vpop.permute.xlu0 %438
    %v441 = vlaneseq
    %v442 = vshrl.u32 %v441, 7
    %v443 = vsub.s32 6, %v442
    %v444 = vrot.slane %v346, %v443
    %v445 = vlaneseq
    %v446 = vshrl.u32 %v445, 7
    %v447 = vsub.s32 6, %v446
    %v448 = vrot.slane %v347, %v447
    %v449 = vmul.f32 %v439, %v444
    %v450 = vmul.f32 %v439, %v448
    %v451 = vadd.f32 %v389, %v449
    %v452 = vadd.f32 %v390, %v450
    %453 = vset.pattern.permute.xlu0 7
    %454 = vperm.xlu0 %453, %v57
    %v455 = vpop.permute.xlu0 %454
    %v457 = vlaneseq
    %v458 = vshrl.u32 %v457, 7
    %v459 = vsub.s32 7, %v458
    %v460 = vrot.slane %v346, %v459
    %v461 = vlaneseq
    %v462 = vshrl.u32 %v461, 7
    %v463 = vsub.s32 7, %v462
    %v464 = vrot.slane %v347, %v463
    %v465 = vmul.f32 %v455, %v460
    %v466 = vmul.f32 %v455, %v464
    %v467 = vadd.f32 %v403, %v465
    %v468 = vadd.f32 %v404, %v466
    %469 = vrot.lane.b32.xlu0 %v333, 16
    %v470 = vpop.permute.xlu0 %469
    %471 = vrot.lane.b32.xlu0 %v334, 16
    %v472 = vpop.permute.xlu0 %471
    %vm473 = vcmp.lt.s32.totalorder %v340, 16
    %v474 = vsel %vm473, %v470, %v472
    %v475 = vsel %vm473, %v472, %v470
    %s476 = scalar_lea.vmem %s11, 16
    %v477 = vld [vmem:[%s476] sm:$0xff]
    %v478 = vld [vmem:[%s476 + $0x8] sm:$0xff]
    %v479 = vmul.f32 %v475, %v477
    %v480 = vmul.f32 %v474, %v478
    %482 = vset.pattern.permute.xlu0 0
    %483 = vperm.xlu0 %482, %v58
    %v484 = vpop.permute.xlu0 %483
    %v486 = vlaneseq
    %v487 = vshrl.u32 %v486, 7
    %v488 = vsub.s32 0, %v487
    %v489 = vrot.slane %v479, %v488
    %v490 = vlaneseq
    %v491 = vshrl.u32 %v490, 7
    %v492 = vsub.s32 0, %v491
    %v493 = vrot.slane %v480, %v492
    %v494 = vmul.f32 %v484, %v489
    %v495 = vmul.f32 %v484, %v493
    %v496 = vadd.f32 %v419, %v494
    %v497 = vadd.f32 %v420, %v495
    %498 = vset.pattern.permute.xlu0 1
    %499 = vperm.xlu0 %498, %v58
    %v500 = vpop.permute.xlu0 %499
    %v502 = vlaneseq
    %v503 = vshrl.u32 %v502, 7
    %v504 = vsub.s32 1, %v503
    %v505 = vrot.slane %v479, %v504
    %v506 = vlaneseq
    %v507 = vshrl.u32 %v506, 7
    %v508 = vsub.s32 1, %v507
    %v509 = vrot.slane %v480, %v508
    %v510 = vmul.f32 %v500, %v505
    %v511 = vmul.f32 %v500, %v509
    %v512 = vadd.f32 %v435, %v510
    %v513 = vadd.f32 %v436, %v511
    %514 = vset.pattern.permute.xlu0 2
    %515 = vperm.xlu0 %514, %v58
    %v516 = vpop.permute.xlu0 %515
    %v518 = vlaneseq
    %v519 = vshrl.u32 %v518, 7
    %v520 = vsub.s32 2, %v519
    %v521 = vrot.slane %v479, %v520
    %v522 = vlaneseq
    %v523 = vshrl.u32 %v522, 7
    %v524 = vsub.s32 2, %v523
    %v525 = vrot.slane %v480, %v524
    %v526 = vmul.f32 %v516, %v521
    %v527 = vmul.f32 %v516, %v525
    %v528 = vadd.f32 %v451, %v526
    %v529 = vadd.f32 %v452, %v527
    %530 = vset.pattern.permute.xlu0 3
    %531 = vperm.xlu0 %530, %v58
    %v532 = vpop.permute.xlu0 %531
    %v534 = vlaneseq
    %v535 = vshrl.u32 %v534, 7
    %v536 = vsub.s32 3, %v535
    %v537 = vrot.slane %v479, %v536
    %v538 = vlaneseq
    %v539 = vshrl.u32 %v538, 7
    %v540 = vsub.s32 3, %v539
    %v541 = vrot.slane %v480, %v540
    %v542 = vmul.f32 %v532, %v537
    %v543 = vmul.f32 %v532, %v541
    %v544 = vadd.f32 %v467, %v542
    %v545 = vadd.f32 %v468, %v543
    %546 = vset.pattern.permute.xlu0 4
    %547 = vperm.xlu0 %546, %v58
    %v548 = vpop.permute.xlu0 %547
    %v550 = vlaneseq
    %v551 = vshrl.u32 %v550, 7
    %v552 = vsub.s32 4, %v551
    %v553 = vrot.slane %v479, %v552
    %v554 = vlaneseq
    %v555 = vshrl.u32 %v554, 7
    %v556 = vsub.s32 4, %v555
    %v557 = vrot.slane %v480, %v556
    %v558 = vmul.f32 %v548, %v553
    %v559 = vmul.f32 %v548, %v557
    %v560 = vadd.f32 %v496, %v558
    %v561 = vadd.f32 %v497, %v559
    %562 = vset.pattern.permute.xlu0 5
    %563 = vperm.xlu0 %562, %v58
    %v564 = vpop.permute.xlu0 %563
    %v566 = vlaneseq
    %v567 = vshrl.u32 %v566, 7
    %v568 = vsub.s32 5, %v567
    %v569 = vrot.slane %v479, %v568
    %v570 = vlaneseq
    %v571 = vshrl.u32 %v570, 7
    %v572 = vsub.s32 5, %v571
    %v573 = vrot.slane %v480, %v572
    %v574 = vmul.f32 %v564, %v569
    %v575 = vmul.f32 %v564, %v573
    %v576 = vadd.f32 %v512, %v574
    %v577 = vadd.f32 %v513, %v575
    %578 = vset.pattern.permute.xlu0 6
    %579 = vperm.xlu0 %578, %v58
    %v580 = vpop.permute.xlu0 %579
    %v582 = vlaneseq
    %v583 = vshrl.u32 %v582, 7
    %v584 = vsub.s32 6, %v583
    %v585 = vrot.slane %v479, %v584
    %v586 = vlaneseq
    %v587 = vshrl.u32 %v586, 7
    %v588 = vsub.s32 6, %v587
    %v589 = vrot.slane %v480, %v588
    %v590 = vmul.f32 %v580, %v585
    %v591 = vmul.f32 %v580, %v589
    %v592 = vadd.f32 %v528, %v590
    %v593 = vadd.f32 %v529, %v591
    %594 = vset.pattern.permute.xlu0 7
    %595 = vperm.xlu0 %594, %v58
    %v596 = vpop.permute.xlu0 %595
    %v598 = vlaneseq
    %v599 = vshrl.u32 %v598, 7
    %v600 = vsub.s32 7, %v599
    %v601 = vrot.slane %v479, %v600
    %v602 = vlaneseq
    %v603 = vshrl.u32 %v602, 7
    %v604 = vsub.s32 7, %v603
    %v605 = vrot.slane %v480, %v604
    %v606 = vmul.f32 %v596, %v601
    %v607 = vmul.f32 %v596, %v605
    %v608 = vadd.f32 %v544, %v606
    %v609 = vadd.f32 %v545, %v607
    %610 = vrot.lane.b32.xlu0 %v333, 15
    %v611 = vpop.permute.xlu0 %610
    %612 = vrot.lane.b32.xlu0 %v334, 15
    %v613 = vpop.permute.xlu0 %612
    %vm614 = vcmp.lt.s32.totalorder %v340, 15
    %v615 = vsel %vm614, %v611, %v613
    %v616 = vsel %vm614, %v613, %v611
    %s617 = scalar_lea.vmem %s11, 32
    %v618 = vld [vmem:[%s617] sm:$0xff]
    %v619 = vld [vmem:[%s617 + $0x8] sm:$0xff]
    %v620 = vmul.f32 %v616, %v618
    %v621 = vmul.f32 %v615, %v619
    %623 = vset.pattern.permute.xlu0 0
    %624 = vperm.xlu0 %623, %v59
    %v625 = vpop.permute.xlu0 %624
    %v627 = vlaneseq
    %v628 = vshrl.u32 %v627, 7
    %v629 = vsub.s32 0, %v628
    %v630 = vrot.slane %v620, %v629
    %v631 = vlaneseq
    %v632 = vshrl.u32 %v631, 7
    %v633 = vsub.s32 0, %v632
    %v634 = vrot.slane %v621, %v633
    %v635 = vmul.f32 %v625, %v630
    %v636 = vmul.f32 %v625, %v634
    %v637 = vadd.f32 %v560, %v635
    %v638 = vadd.f32 %v561, %v636
    %639 = vset.pattern.permute.xlu0 1
    %640 = vperm.xlu0 %639, %v59
    %v641 = vpop.permute.xlu0 %640
    %v643 = vlaneseq
    %v644 = vshrl.u32 %v643, 7
    %v645 = vsub.s32 1, %v644
    %v646 = vrot.slane %v620, %v645
    %v647 = vlaneseq
    %v648 = vshrl.u32 %v647, 7
    %v649 = vsub.s32 1, %v648
    %v650 = vrot.slane %v621, %v649
    %v651 = vmul.f32 %v641, %v646
    %v652 = vmul.f32 %v641, %v650
    %v653 = vadd.f32 %v576, %v651
    %v654 = vadd.f32 %v577, %v652
    %655 = vset.pattern.permute.xlu0 2
    %656 = vperm.xlu0 %655, %v59
    %v657 = vpop.permute.xlu0 %656
    %v659 = vlaneseq
    %v660 = vshrl.u32 %v659, 7
    %v661 = vsub.s32 2, %v660
    %v662 = vrot.slane %v620, %v661
    %v663 = vlaneseq
    %v664 = vshrl.u32 %v663, 7
    %v665 = vsub.s32 2, %v664
    %v666 = vrot.slane %v621, %v665
    %v667 = vmul.f32 %v657, %v662
    %v668 = vmul.f32 %v657, %v666
    %v669 = vadd.f32 %v592, %v667
    %v670 = vadd.f32 %v593, %v668
    %671 = vset.pattern.permute.xlu0 3
    %672 = vperm.xlu0 %671, %v59
    %v673 = vpop.permute.xlu0 %672
    %v675 = vlaneseq
    %v676 = vshrl.u32 %v675, 7
    %v677 = vsub.s32 3, %v676
    %v678 = vrot.slane %v620, %v677
    %v679 = vlaneseq
    %v680 = vshrl.u32 %v679, 7
    %v681 = vsub.s32 3, %v680
    %v682 = vrot.slane %v621, %v681
    %v683 = vmul.f32 %v673, %v678
    %v684 = vmul.f32 %v673, %v682
    %v685 = vadd.f32 %v608, %v683
    %v686 = vadd.f32 %v609, %v684
    %687 = vset.pattern.permute.xlu0 4
    %688 = vperm.xlu0 %687, %v59
    %v689 = vpop.permute.xlu0 %688
    %v691 = vlaneseq
    %v692 = vshrl.u32 %v691, 7
    %v693 = vsub.s32 4, %v692
    %v694 = vrot.slane %v620, %v693
    %v695 = vlaneseq
    %v696 = vshrl.u32 %v695, 7
    %v697 = vsub.s32 4, %v696
    %v698 = vrot.slane %v621, %v697
    %v699 = vmul.f32 %v689, %v694
    %v700 = vmul.f32 %v689, %v698
    %v701 = vadd.f32 %v637, %v699
    %v702 = vadd.f32 %v638, %v700
    %703 = vset.pattern.permute.xlu0 5
    %704 = vperm.xlu0 %703, %v59
    %v705 = vpop.permute.xlu0 %704
    %v707 = vlaneseq
    %v708 = vshrl.u32 %v707, 7
    %v709 = vsub.s32 5, %v708
    %v710 = vrot.slane %v620, %v709
    %v711 = vlaneseq
    %v712 = vshrl.u32 %v711, 7
    %v713 = vsub.s32 5, %v712
    %v714 = vrot.slane %v621, %v713
    %v715 = vmul.f32 %v705, %v710
    %v716 = vmul.f32 %v705, %v714
    %v717 = vadd.f32 %v653, %v715
    %v718 = vadd.f32 %v654, %v716
    %719 = vset.pattern.permute.xlu0 6
    %720 = vperm.xlu0 %719, %v59
    %v721 = vpop.permute.xlu0 %720
    %v723 = vlaneseq
    %v724 = vshrl.u32 %v723, 7
    %v725 = vsub.s32 6, %v724
    %v726 = vrot.slane %v620, %v725
    %v727 = vlaneseq
    %v728 = vshrl.u32 %v727, 7
    %v729 = vsub.s32 6, %v728
    %v730 = vrot.slane %v621, %v729
    %v731 = vmul.f32 %v721, %v726
    %v732 = vmul.f32 %v721, %v730
    %v733 = vadd.f32 %v669, %v731
    %v734 = vadd.f32 %v670, %v732
    %735 = vset.pattern.permute.xlu0 7
    %736 = vperm.xlu0 %735, %v59
    %v737 = vpop.permute.xlu0 %736
    %v739 = vlaneseq
    %v740 = vshrl.u32 %v739, 7
    %v741 = vsub.s32 7, %v740
    %v742 = vrot.slane %v620, %v741
    %v743 = vlaneseq
    %v744 = vshrl.u32 %v743, 7
    %v745 = vsub.s32 7, %v744
    %v746 = vrot.slane %v621, %v745
    %v747 = vmul.f32 %v737, %v742
    %v748 = vmul.f32 %v737, %v746
    %v749 = vadd.f32 %v685, %v747
    %v750 = vadd.f32 %v686, %v748
    %751 = vrot.lane.b32.xlu0 %v333, 1
    %v752 = vpop.permute.xlu0 %751
    %753 = vrot.lane.b32.xlu0 %v334, 1
    %v754 = vpop.permute.xlu0 %753
    %vm755 = vcmp.lt.s32.totalorder %v340, 1
    %v756 = vsel %vm755, %v752, %v754
    %v757 = vsel %vm755, %v754, %v752
    %s758 = scalar_lea.vmem %s11, 48
    %v759 = vld [vmem:[%s758] sm:$0xff]
    %v760 = vld [vmem:[%s758 + $0x8] sm:$0xff]
    %v761 = vmul.f32 %v757, %v759
    %v762 = vmul.f32 %v756, %v760
    %764 = vset.pattern.permute.xlu0 0
    %765 = vperm.xlu0 %764, %v60
    %v766 = vpop.permute.xlu0 %765
    %v768 = vlaneseq
    %v769 = vshrl.u32 %v768, 7
    %v770 = vsub.s32 0, %v769
    %v771 = vrot.slane %v761, %v770
    %v772 = vlaneseq
    %v773 = vshrl.u32 %v772, 7
    %v774 = vsub.s32 0, %v773
    %v775 = vrot.slane %v762, %v774
    %v776 = vmul.f32 %v766, %v771
    %v777 = vmul.f32 %v766, %v775
    %v778 = vadd.f32 %v701, %v776
    %v779 = vadd.f32 %v702, %v777
    %780 = vset.pattern.permute.xlu0 1
    %781 = vperm.xlu0 %780, %v60
    %v782 = vpop.permute.xlu0 %781
    %v784 = vlaneseq
    %v785 = vshrl.u32 %v784, 7
    %v786 = vsub.s32 1, %v785
    %v787 = vrot.slane %v761, %v786
    %v788 = vlaneseq
    %v789 = vshrl.u32 %v788, 7
    %v790 = vsub.s32 1, %v789
    %v791 = vrot.slane %v762, %v790
    %v792 = vmul.f32 %v782, %v787
    %v793 = vmul.f32 %v782, %v791
    %v794 = vadd.f32 %v717, %v792
    %v795 = vadd.f32 %v718, %v793
    %796 = vset.pattern.permute.xlu0 2
    %797 = vperm.xlu0 %796, %v60
    %v798 = vpop.permute.xlu0 %797
    %v800 = vlaneseq
    %v801 = vshrl.u32 %v800, 7
    %v802 = vsub.s32 2, %v801
    %v803 = vrot.slane %v761, %v802
    %v804 = vlaneseq
    %v805 = vshrl.u32 %v804, 7
    %v806 = vsub.s32 2, %v805
    %v807 = vrot.slane %v762, %v806
    %v808 = vmul.f32 %v798, %v803
    %v809 = vmul.f32 %v798, %v807
    %v810 = vadd.f32 %v733, %v808
    %v811 = vadd.f32 %v734, %v809
    %812 = vset.pattern.permute.xlu0 3
    %813 = vperm.xlu0 %812, %v60
    %v814 = vpop.permute.xlu0 %813
    %v816 = vlaneseq
    %v817 = vshrl.u32 %v816, 7
    %v818 = vsub.s32 3, %v817
    %v819 = vrot.slane %v761, %v818
    %v820 = vlaneseq
    %v821 = vshrl.u32 %v820, 7
    %v822 = vsub.s32 3, %v821
    %v823 = vrot.slane %v762, %v822
    %v824 = vmul.f32 %v814, %v819
    %v825 = vmul.f32 %v814, %v823
    %v826 = vadd.f32 %v749, %v824
    %v827 = vadd.f32 %v750, %v825
    %828 = vset.pattern.permute.xlu0 4
    %829 = vperm.xlu0 %828, %v60
    %v830 = vpop.permute.xlu0 %829
    %v832 = vlaneseq
    %v833 = vshrl.u32 %v832, 7
    %v834 = vsub.s32 4, %v833
    %v835 = vrot.slane %v761, %v834
    %v836 = vlaneseq
    %v837 = vshrl.u32 %v836, 7
    %v838 = vsub.s32 4, %v837
    %v839 = vrot.slane %v762, %v838
    %v840 = vmul.f32 %v830, %v835
    %v841 = vmul.f32 %v830, %v839
    %v842 = vadd.f32 %v778, %v840
    %v843 = vadd.f32 %v779, %v841
    %844 = vset.pattern.permute.xlu0 5
    %845 = vperm.xlu0 %844, %v60
    %v846 = vpop.permute.xlu0 %845
    %v848 = vlaneseq
    %v849 = vshrl.u32 %v848, 7
    %v850 = vsub.s32 5, %v849
    %v851 = vrot.slane %v761, %v850
    %v852 = vlaneseq
    %v853 = vshrl.u32 %v852, 7
    %v854 = vsub.s32 5, %v853
    %v855 = vrot.slane %v762, %v854
    %v856 = vmul.f32 %v846, %v851
    %v857 = vmul.f32 %v846, %v855
    %v858 = vadd.f32 %v794, %v856
    %v859 = vadd.f32 %v795, %v857
    %860 = vset.pattern.permute.xlu0 6
    %861 = vperm.xlu0 %860, %v60
    %v862 = vpop.permute.xlu0 %861
    %v864 = vlaneseq
    %v865 = vshrl.u32 %v864, 7
    %v866 = vsub.s32 6, %v865
    %v867 = vrot.slane %v761, %v866
    %v868 = vlaneseq
    %v869 = vshrl.u32 %v868, 7
    %v870 = vsub.s32 6, %v869
    %v871 = vrot.slane %v762, %v870
    %v872 = vmul.f32 %v862, %v867
    %v873 = vmul.f32 %v862, %v871
    %v874 = vadd.f32 %v810, %v872
    %v875 = vadd.f32 %v811, %v873
    %876 = vset.pattern.permute.xlu0 7
    %877 = vperm.xlu0 %876, %v60
    %v878 = vpop.permute.xlu0 %877
    %v880 = vlaneseq
    %v881 = vshrl.u32 %v880, 7
    %v882 = vsub.s32 7, %v881
    %v883 = vrot.slane %v761, %v882
    %v884 = vlaneseq
    %v885 = vshrl.u32 %v884, 7
    %v886 = vsub.s32 7, %v885
    %v887 = vrot.slane %v762, %v886
    %v888 = vmul.f32 %v878, %v883
    %v889 = vmul.f32 %v878, %v887
    %v890 = vadd.f32 %v826, %v888
    %v891 = vadd.f32 %v827, %v889
    %893 = vset.pattern.permute.xlu0 0
    %894 = vperm.xlu0 %893, %v61
    %v895 = vpop.permute.xlu0 %894
    %v897 = vlaneseq
    %v898 = vshrl.u32 %v897, 7
    %v899 = vsub.s32 0, %v898
    %v900 = vrot.slane %v333, %v899
    %v901 = vlaneseq
    %v902 = vshrl.u32 %v901, 7
    %v903 = vsub.s32 0, %v902
    %v904 = vrot.slane %v334, %v903
    %v905 = vmul.f32 %v895, %v900
    %v906 = vmul.f32 %v895, %v904
    %v907 = vadd.f32 %v842, %v905
    %v908 = vadd.f32 %v843, %v906
    %909 = vset.pattern.permute.xlu0 1
    %910 = vperm.xlu0 %909, %v61
    %v911 = vpop.permute.xlu0 %910
    %v913 = vlaneseq
    %v914 = vshrl.u32 %v913, 7
    %v915 = vsub.s32 1, %v914
    %v916 = vrot.slane %v333, %v915
    %v917 = vlaneseq
    %v918 = vshrl.u32 %v917, 7
    %v919 = vsub.s32 1, %v918
    %v920 = vrot.slane %v334, %v919
    %v921 = vmul.f32 %v911, %v916
    %v922 = vmul.f32 %v911, %v920
    %v923 = vadd.f32 %v858, %v921
    %v924 = vadd.f32 %v859, %v922
    %925 = vset.pattern.permute.xlu0 2
    %926 = vperm.xlu0 %925, %v61
    %v927 = vpop.permute.xlu0 %926
    %v929 = vlaneseq
    %v930 = vshrl.u32 %v929, 7
    %v931 = vsub.s32 2, %v930
    %v932 = vrot.slane %v333, %v931
    %v933 = vlaneseq
    %v934 = vshrl.u32 %v933, 7
    %v935 = vsub.s32 2, %v934
    %v936 = vrot.slane %v334, %v935
    %v937 = vmul.f32 %v927, %v932
    %v938 = vmul.f32 %v927, %v936
    %v939 = vadd.f32 %v874, %v937
    %v940 = vadd.f32 %v875, %v938
    %941 = vset.pattern.permute.xlu0 3
    %942 = vperm.xlu0 %941, %v61
    %v943 = vpop.permute.xlu0 %942
    %v945 = vlaneseq
    %v946 = vshrl.u32 %v945, 7
    %v947 = vsub.s32 3, %v946
    %v948 = vrot.slane %v333, %v947
    %v949 = vlaneseq
    %v950 = vshrl.u32 %v949, 7
    %v951 = vsub.s32 3, %v950
    %v952 = vrot.slane %v334, %v951
    %v953 = vmul.f32 %v943, %v948
    %v954 = vmul.f32 %v943, %v952
    %v955 = vadd.f32 %v890, %v953
    %v956 = vadd.f32 %v891, %v954
    %957 = vset.pattern.permute.xlu0 4
    %958 = vperm.xlu0 %957, %v61
    %v959 = vpop.permute.xlu0 %958
    %v961 = vlaneseq
    %v962 = vshrl.u32 %v961, 7
    %v963 = vsub.s32 4, %v962
    %v964 = vrot.slane %v333, %v963
    %v965 = vlaneseq
    %v966 = vshrl.u32 %v965, 7
    %v967 = vsub.s32 4, %v966
    %v968 = vrot.slane %v334, %v967
    %v969 = vmul.f32 %v959, %v964
    %v970 = vmul.f32 %v959, %v968
    %v971 = vadd.f32 %v907, %v969
    %v972 = vadd.f32 %v908, %v970
    %973 = vset.pattern.permute.xlu0 5
    %974 = vperm.xlu0 %973, %v61
    %v975 = vpop.permute.xlu0 %974
    %v977 = vlaneseq
    %v978 = vshrl.u32 %v977, 7
    %v979 = vsub.s32 5, %v978
    %v980 = vrot.slane %v333, %v979
    %v981 = vlaneseq
    %v982 = vshrl.u32 %v981, 7
    %v983 = vsub.s32 5, %v982
    %v984 = vrot.slane %v334, %v983
    %v985 = vmul.f32 %v975, %v980
    %v986 = vmul.f32 %v975, %v984
    %v987 = vadd.f32 %v923, %v985
    %v988 = vadd.f32 %v924, %v986
    %989 = vset.pattern.permute.xlu0 6
    %990 = vperm.xlu0 %989, %v61
    %v991 = vpop.permute.xlu0 %990
    %v993 = vlaneseq
    %v994 = vshrl.u32 %v993, 7
    %v995 = vsub.s32 6, %v994
    %v996 = vrot.slane %v333, %v995
    %v997 = vlaneseq
    %v998 = vshrl.u32 %v997, 7
    %v999 = vsub.s32 6, %v998
    %v1000 = vrot.slane %v334, %v999
    %v1001 = vmul.f32 %v991, %v996
    %v1002 = vmul.f32 %v991, %v1000
    %v1003 = vadd.f32 %v939, %v1001
    %v1004 = vadd.f32 %v940, %v1002
    %1005 = vset.pattern.permute.xlu0 7
    %1006 = vperm.xlu0 %1005, %v61
    %v1007 = vpop.permute.xlu0 %1006
    %v1009 = vlaneseq
    %v1010 = vshrl.u32 %v1009, 7
    %v1011 = vsub.s32 7, %v1010
    %v1012 = vrot.slane %v333, %v1011
    %v1013 = vlaneseq
    %v1014 = vshrl.u32 %v1013, 7
    %v1015 = vsub.s32 7, %v1014
    %v1016 = vrot.slane %v334, %v1015
    %v1017 = vmul.f32 %v1007, %v1012
    %v1018 = vmul.f32 %v1007, %v1016
    %v1019 = vadd.f32 %v955, %v1017
    %v1020 = vadd.f32 %v956, %v1018
    %1021 = vrot.lane.b32.xlu0 %v333, 127
    %v1022 = vpop.permute.xlu0 %1021
    %1023 = vrot.lane.b32.xlu0 %v334, 127
    %v1024 = vpop.permute.xlu0 %1023
    %vm1025 = vcmp.lt.s32.totalorder %v340, 127
    %v1026 = vsel %vm1025, %v1022, %v1024
    %v1027 = vsel %vm1025, %v1024, %v1022
    %s1028 = scalar_lea.vmem %s11, 80
    %v1029 = vld [vmem:[%s1028] sm:$0xff]
    %v1030 = vld [vmem:[%s1028 + $0x8] sm:$0xff]
    %v1031 = vmul.f32 %v1026, %v1029
    %v1032 = vmul.f32 %v1027, %v1030
    %1034 = vset.pattern.permute.xlu0 0
    %1035 = vperm.xlu0 %1034, %v62
    %v1036 = vpop.permute.xlu0 %1035
    %v1038 = vlaneseq
    %v1039 = vshrl.u32 %v1038, 7
    %v1040 = vsub.s32 0, %v1039
    %v1041 = vrot.slane %v1031, %v1040
    %v1042 = vlaneseq
    %v1043 = vshrl.u32 %v1042, 7
    %v1044 = vsub.s32 0, %v1043
    %v1045 = vrot.slane %v1032, %v1044
    %v1046 = vmul.f32 %v1036, %v1041
    %v1047 = vmul.f32 %v1036, %v1045
    %v1048 = vadd.f32 %v971, %v1046
    %v1049 = vadd.f32 %v972, %v1047
    %1050 = vset.pattern.permute.xlu0 1
    %1051 = vperm.xlu0 %1050, %v62
    %v1052 = vpop.permute.xlu0 %1051
    %v1054 = vlaneseq
    %v1055 = vshrl.u32 %v1054, 7
    %v1056 = vsub.s32 1, %v1055
    %v1057 = vrot.slane %v1031, %v1056
    %v1058 = vlaneseq
    %v1059 = vshrl.u32 %v1058, 7
    %v1060 = vsub.s32 1, %v1059
    %v1061 = vrot.slane %v1032, %v1060
    %v1062 = vmul.f32 %v1052, %v1057
    %v1063 = vmul.f32 %v1052, %v1061
    %v1064 = vadd.f32 %v987, %v1062
    %v1065 = vadd.f32 %v988, %v1063
    %1066 = vset.pattern.permute.xlu0 2
    %1067 = vperm.xlu0 %1066, %v62
    %v1068 = vpop.permute.xlu0 %1067
    %v1070 = vlaneseq
    %v1071 = vshrl.u32 %v1070, 7
    %v1072 = vsub.s32 2, %v1071
    %v1073 = vrot.slane %v1031, %v1072
    %v1074 = vlaneseq
    %v1075 = vshrl.u32 %v1074, 7
    %v1076 = vsub.s32 2, %v1075
    %v1077 = vrot.slane %v1032, %v1076
    %v1078 = vmul.f32 %v1068, %v1073
    %v1079 = vmul.f32 %v1068, %v1077
    %v1080 = vadd.f32 %v1003, %v1078
    %v1081 = vadd.f32 %v1004, %v1079
    %1082 = vset.pattern.permute.xlu0 3
    %1083 = vperm.xlu0 %1082, %v62
    %v1084 = vpop.permute.xlu0 %1083
    %v1086 = vlaneseq
    %v1087 = vshrl.u32 %v1086, 7
    %v1088 = vsub.s32 3, %v1087
    %v1089 = vrot.slane %v1031, %v1088
    %v1090 = vlaneseq
    %v1091 = vshrl.u32 %v1090, 7
    %v1092 = vsub.s32 3, %v1091
    %v1093 = vrot.slane %v1032, %v1092
    %v1094 = vmul.f32 %v1084, %v1089
    %v1095 = vmul.f32 %v1084, %v1093
    %v1096 = vadd.f32 %v1019, %v1094
    %v1097 = vadd.f32 %v1020, %v1095
    %1098 = vset.pattern.permute.xlu0 4
    %1099 = vperm.xlu0 %1098, %v62
    %v1100 = vpop.permute.xlu0 %1099
    %v1102 = vlaneseq
    %v1103 = vshrl.u32 %v1102, 7
    %v1104 = vsub.s32 4, %v1103
    %v1105 = vrot.slane %v1031, %v1104
    %v1106 = vlaneseq
    %v1107 = vshrl.u32 %v1106, 7
    %v1108 = vsub.s32 4, %v1107
    %v1109 = vrot.slane %v1032, %v1108
    %v1110 = vmul.f32 %v1100, %v1105
    %v1111 = vmul.f32 %v1100, %v1109
    %v1112 = vadd.f32 %v1048, %v1110
    %v1113 = vadd.f32 %v1049, %v1111
    %1114 = vset.pattern.permute.xlu0 5
    %1115 = vperm.xlu0 %1114, %v62
    %v1116 = vpop.permute.xlu0 %1115
    %v1118 = vlaneseq
    %v1119 = vshrl.u32 %v1118, 7
    %v1120 = vsub.s32 5, %v1119
    %v1121 = vrot.slane %v1031, %v1120
    %v1122 = vlaneseq
    %v1123 = vshrl.u32 %v1122, 7
    %v1124 = vsub.s32 5, %v1123
    %v1125 = vrot.slane %v1032, %v1124
    %v1126 = vmul.f32 %v1116, %v1121
    %v1127 = vmul.f32 %v1116, %v1125
    %v1128 = vadd.f32 %v1064, %v1126
    %v1129 = vadd.f32 %v1065, %v1127
    %1130 = vset.pattern.permute.xlu0 6
    %1131 = vperm.xlu0 %1130, %v62
    %v1132 = vpop.permute.xlu0 %1131
    %v1134 = vlaneseq
    %v1135 = vshrl.u32 %v1134, 7
    %v1136 = vsub.s32 6, %v1135
    %v1137 = vrot.slane %v1031, %v1136
    %v1138 = vlaneseq
    %v1139 = vshrl.u32 %v1138, 7
    %v1140 = vsub.s32 6, %v1139
    %v1141 = vrot.slane %v1032, %v1140
    %v1142 = vmul.f32 %v1132, %v1137
    %v1143 = vmul.f32 %v1132, %v1141
    %v1144 = vadd.f32 %v1080, %v1142
    %v1145 = vadd.f32 %v1081, %v1143
    %1146 = vset.pattern.permute.xlu0 7
    %1147 = vperm.xlu0 %1146, %v62
    %v1148 = vpop.permute.xlu0 %1147
    %v1150 = vlaneseq
    %v1151 = vshrl.u32 %v1150, 7
    %v1152 = vsub.s32 7, %v1151
    %v1153 = vrot.slane %v1031, %v1152
    %v1154 = vlaneseq
    %v1155 = vshrl.u32 %v1154, 7
    %v1156 = vsub.s32 7, %v1155
    %v1157 = vrot.slane %v1032, %v1156
    %v1158 = vmul.f32 %v1148, %v1153
    %v1159 = vmul.f32 %v1148, %v1157
    %v1160 = vadd.f32 %v1096, %v1158
    %v1161 = vadd.f32 %v1097, %v1159
    %1162 = vrot.lane.b32.xlu0 %v333, 113
    %v1163 = vpop.permute.xlu0 %1162
    %1164 = vrot.lane.b32.xlu0 %v334, 113
    %v1165 = vpop.permute.xlu0 %1164
    %vm1166 = vcmp.lt.s32.totalorder %v340, 113
    %v1167 = vsel %vm1166, %v1163, %v1165
    %v1168 = vsel %vm1166, %v1165, %v1163
    %s1169 = scalar_lea.vmem %s11, 96
    %v1170 = vld [vmem:[%s1169] sm:$0xff]
    %v1171 = vld [vmem:[%s1169 + $0x8] sm:$0xff]
    %v1172 = vmul.f32 %v1167, %v1170
    %v1173 = vmul.f32 %v1168, %v1171
    %1175 = vset.pattern.permute.xlu0 0
    %1176 = vperm.xlu0 %1175, %v63
    %v1177 = vpop.permute.xlu0 %1176
    %v1179 = vlaneseq
    %v1180 = vshrl.u32 %v1179, 7
    %v1181 = vsub.s32 0, %v1180
    %v1182 = vrot.slane %v1172, %v1181
    %v1183 = vlaneseq
    %v1184 = vshrl.u32 %v1183, 7
    %v1185 = vsub.s32 0, %v1184
    %v1186 = vrot.slane %v1173, %v1185
    %v1187 = vmul.f32 %v1177, %v1182
    %v1188 = vmul.f32 %v1177, %v1186
    %v1189 = vadd.f32 %v1112, %v1187
    %v1190 = vadd.f32 %v1113, %v1188
    %1191 = vset.pattern.permute.xlu0 1
    %1192 = vperm.xlu0 %1191, %v63
    %v1193 = vpop.permute.xlu0 %1192
    %v1195 = vlaneseq
    %v1196 = vshrl.u32 %v1195, 7
    %v1197 = vsub.s32 1, %v1196
    %v1198 = vrot.slane %v1172, %v1197
    %v1199 = vlaneseq
    %v1200 = vshrl.u32 %v1199, 7
    %v1201 = vsub.s32 1, %v1200
    %v1202 = vrot.slane %v1173, %v1201
    %v1203 = vmul.f32 %v1193, %v1198
    %v1204 = vmul.f32 %v1193, %v1202
    %v1205 = vadd.f32 %v1128, %v1203
    %v1206 = vadd.f32 %v1129, %v1204
    %1207 = vset.pattern.permute.xlu0 2
    %1208 = vperm.xlu0 %1207, %v63
    %v1209 = vpop.permute.xlu0 %1208
    %v1211 = vlaneseq
    %v1212 = vshrl.u32 %v1211, 7
    %v1213 = vsub.s32 2, %v1212
    %v1214 = vrot.slane %v1172, %v1213
    %v1215 = vlaneseq
    %v1216 = vshrl.u32 %v1215, 7
    %v1217 = vsub.s32 2, %v1216
    %v1218 = vrot.slane %v1173, %v1217
    %v1219 = vmul.f32 %v1209, %v1214
    %v1220 = vmul.f32 %v1209, %v1218
    %v1221 = vadd.f32 %v1144, %v1219
    %v1222 = vadd.f32 %v1145, %v1220
    %1223 = vset.pattern.permute.xlu0 3
    %1224 = vperm.xlu0 %1223, %v63
    %v1225 = vpop.permute.xlu0 %1224
    %v1227 = vlaneseq
    %v1228 = vshrl.u32 %v1227, 7
    %v1229 = vsub.s32 3, %v1228
    %v1230 = vrot.slane %v1172, %v1229
    %v1231 = vlaneseq
    %v1232 = vshrl.u32 %v1231, 7
    %v1233 = vsub.s32 3, %v1232
    %v1234 = vrot.slane %v1173, %v1233
    %v1235 = vmul.f32 %v1225, %v1230
    %v1236 = vmul.f32 %v1225, %v1234
    %v1237 = vadd.f32 %v1160, %v1235
    %v1238 = vadd.f32 %v1161, %v1236
    %1239 = vset.pattern.permute.xlu0 4
    %1240 = vperm.xlu0 %1239, %v63
    %v1241 = vpop.permute.xlu0 %1240
    %v1243 = vlaneseq
    %v1244 = vshrl.u32 %v1243, 7
    %v1245 = vsub.s32 4, %v1244
    %v1246 = vrot.slane %v1172, %v1245
    %v1247 = vlaneseq
    %v1248 = vshrl.u32 %v1247, 7
    %v1249 = vsub.s32 4, %v1248
    %v1250 = vrot.slane %v1173, %v1249
    %v1251 = vmul.f32 %v1241, %v1246
    %v1252 = vmul.f32 %v1241, %v1250
    %v1253 = vadd.f32 %v1189, %v1251
    %v1254 = vadd.f32 %v1190, %v1252
    %1255 = vset.pattern.permute.xlu0 5
    %1256 = vperm.xlu0 %1255, %v63
    %v1257 = vpop.permute.xlu0 %1256
    %v1259 = vlaneseq
    %v1260 = vshrl.u32 %v1259, 7
    %v1261 = vsub.s32 5, %v1260
    %v1262 = vrot.slane %v1172, %v1261
    %v1263 = vlaneseq
    %v1264 = vshrl.u32 %v1263, 7
    %v1265 = vsub.s32 5, %v1264
    %v1266 = vrot.slane %v1173, %v1265
    %v1267 = vmul.f32 %v1257, %v1262
    %v1268 = vmul.f32 %v1257, %v1266
    %v1269 = vadd.f32 %v1205, %v1267
    %v1270 = vadd.f32 %v1206, %v1268
    %1271 = vset.pattern.permute.xlu0 6
    %1272 = vperm.xlu0 %1271, %v63
    %v1273 = vpop.permute.xlu0 %1272
    %v1275 = vlaneseq
    %v1276 = vshrl.u32 %v1275, 7
    %v1277 = vsub.s32 6, %v1276
    %v1278 = vrot.slane %v1172, %v1277
    %v1279 = vlaneseq
    %v1280 = vshrl.u32 %v1279, 7
    %v1281 = vsub.s32 6, %v1280
    %v1282 = vrot.slane %v1173, %v1281
    %v1283 = vmul.f32 %v1273, %v1278
    %v1284 = vmul.f32 %v1273, %v1282
    %v1285 = vadd.f32 %v1221, %v1283
    %v1286 = vadd.f32 %v1222, %v1284
    %1287 = vset.pattern.permute.xlu0 7
    %1288 = vperm.xlu0 %1287, %v63
    %v1289 = vpop.permute.xlu0 %1288
    %v1291 = vlaneseq
    %v1292 = vshrl.u32 %v1291, 7
    %v1293 = vsub.s32 7, %v1292
    %v1294 = vrot.slane %v1172, %v1293
    %v1295 = vlaneseq
    %v1296 = vshrl.u32 %v1295, 7
    %v1297 = vsub.s32 7, %v1296
    %v1298 = vrot.slane %v1173, %v1297
    %v1299 = vmul.f32 %v1289, %v1294
    %v1300 = vmul.f32 %v1289, %v1298
    %v1301 = vadd.f32 %v1237, %v1299
    %v1302 = vadd.f32 %v1238, %v1300
    %1303 = vrot.lane.b32.xlu0 %v333, 112
    %v1304 = vpop.permute.xlu0 %1303
    %1305 = vrot.lane.b32.xlu0 %v334, 112
    %v1306 = vpop.permute.xlu0 %1305
    %vm1307 = vcmp.lt.s32.totalorder %v340, 112
    %v1308 = vsel %vm1307, %v1304, %v1306
    %v1309 = vsel %vm1307, %v1306, %v1304
    %s1310 = scalar_lea.vmem %s11, 112
    %v1311 = vld [vmem:[%s1310] sm:$0xff]
    %v1312 = vld [vmem:[%s1310 + $0x8] sm:$0xff]
    %v1313 = vmul.f32 %v1308, %v1311
    %v1314 = vmul.f32 %v1309, %v1312
    %1316 = vset.pattern.permute.xlu0 0
    %1317 = vperm.xlu0 %1316, %v64
    %v1318 = vpop.permute.xlu0 %1317
    %v1320 = vlaneseq
    %v1321 = vshrl.u32 %v1320, 7
    %v1322 = vsub.s32 0, %v1321
    %v1323 = vrot.slane %v1313, %v1322
    %v1324 = vlaneseq
    %v1325 = vshrl.u32 %v1324, 7
    %v1326 = vsub.s32 0, %v1325
    %v1327 = vrot.slane %v1314, %v1326
    %v1328 = vmul.f32 %v1318, %v1323
    %v1329 = vmul.f32 %v1318, %v1327
    %v1330 = vadd.f32 %v1253, %v1328
    %v1331 = vadd.f32 %v1254, %v1329
    %1332 = vset.pattern.permute.xlu0 1
    %1333 = vperm.xlu0 %1332, %v64
    %v1334 = vpop.permute.xlu0 %1333
    %v1336 = vlaneseq
    %v1337 = vshrl.u32 %v1336, 7
    %v1338 = vsub.s32 1, %v1337
    %v1339 = vrot.slane %v1313, %v1338
    %v1340 = vlaneseq
    %v1341 = vshrl.u32 %v1340, 7
    %v1342 = vsub.s32 1, %v1341
    %v1343 = vrot.slane %v1314, %v1342
    %v1344 = vmul.f32 %v1334, %v1339
    %v1345 = vmul.f32 %v1334, %v1343
    %v1346 = vadd.f32 %v1269, %v1344
    %v1347 = vadd.f32 %v1270, %v1345
    %1348 = vset.pattern.permute.xlu0 2
    %1349 = vperm.xlu0 %1348, %v64
    %v1350 = vpop.permute.xlu0 %1349
    %v1352 = vlaneseq
    %v1353 = vshrl.u32 %v1352, 7
    %v1354 = vsub.s32 2, %v1353
    %v1355 = vrot.slane %v1313, %v1354
    %v1356 = vlaneseq
    %v1357 = vshrl.u32 %v1356, 7
    %v1358 = vsub.s32 2, %v1357
    %v1359 = vrot.slane %v1314, %v1358
    %v1360 = vmul.f32 %v1350, %v1355
    %v1361 = vmul.f32 %v1350, %v1359
    %v1362 = vadd.f32 %v1285, %v1360
    %v1363 = vadd.f32 %v1286, %v1361
    %1364 = vset.pattern.permute.xlu0 3
    %1365 = vperm.xlu0 %1364, %v64
    %v1366 = vpop.permute.xlu0 %1365
    %v1368 = vlaneseq
    %v1369 = vshrl.u32 %v1368, 7
    %v1370 = vsub.s32 3, %v1369
    %v1371 = vrot.slane %v1313, %v1370
    %v1372 = vlaneseq
    %v1373 = vshrl.u32 %v1372, 7
    %v1374 = vsub.s32 3, %v1373
    %v1375 = vrot.slane %v1314, %v1374
    %v1376 = vmul.f32 %v1366, %v1371
    %v1377 = vmul.f32 %v1366, %v1375
    %v1378 = vadd.f32 %v1301, %v1376
    %v1379 = vadd.f32 %v1302, %v1377
    %1380 = vset.pattern.permute.xlu0 4
    %1381 = vperm.xlu0 %1380, %v64
    %v1382 = vpop.permute.xlu0 %1381
    %v1384 = vlaneseq
    %v1385 = vshrl.u32 %v1384, 7
    %v1386 = vsub.s32 4, %v1385
    %v1387 = vrot.slane %v1313, %v1386
    %v1388 = vlaneseq
    %v1389 = vshrl.u32 %v1388, 7
    %v1390 = vsub.s32 4, %v1389
    %v1391 = vrot.slane %v1314, %v1390
    %v1392 = vmul.f32 %v1382, %v1387
    %v1393 = vmul.f32 %v1382, %v1391
    %v1394 = vadd.f32 %v1330, %v1392
    %v1395 = vadd.f32 %v1331, %v1393
    %1396 = vset.pattern.permute.xlu0 5
    %1397 = vperm.xlu0 %1396, %v64
    %v1398 = vpop.permute.xlu0 %1397
    %v1400 = vlaneseq
    %v1401 = vshrl.u32 %v1400, 7
    %v1402 = vsub.s32 5, %v1401
    %v1403 = vrot.slane %v1313, %v1402
    %v1404 = vlaneseq
    %v1405 = vshrl.u32 %v1404, 7
    %v1406 = vsub.s32 5, %v1405
    %v1407 = vrot.slane %v1314, %v1406
    %v1408 = vmul.f32 %v1398, %v1403
    %v1409 = vmul.f32 %v1398, %v1407
    %v1410 = vadd.f32 %v1346, %v1408
    %v1411 = vadd.f32 %v1347, %v1409
    %1412 = vset.pattern.permute.xlu0 6
    %1413 = vperm.xlu0 %1412, %v64
    %v1414 = vpop.permute.xlu0 %1413
    %v1416 = vlaneseq
    %v1417 = vshrl.u32 %v1416, 7
    %v1418 = vsub.s32 6, %v1417
    %v1419 = vrot.slane %v1313, %v1418
    %v1420 = vlaneseq
    %v1421 = vshrl.u32 %v1420, 7
    %v1422 = vsub.s32 6, %v1421
    %v1423 = vrot.slane %v1314, %v1422
    %v1424 = vmul.f32 %v1414, %v1419
    %v1425 = vmul.f32 %v1414, %v1423
    %v1426 = vadd.f32 %v1362, %v1424
    %v1427 = vadd.f32 %v1363, %v1425
    %1428 = vset.pattern.permute.xlu0 7
    %1429 = vperm.xlu0 %1428, %v64
    %v1430 = vpop.permute.xlu0 %1429
    %v1432 = vlaneseq
    %v1433 = vshrl.u32 %v1432, 7
    %v1434 = vsub.s32 7, %v1433
    %v1435 = vrot.slane %v1313, %v1434
    %v1436 = vlaneseq
    %v1437 = vshrl.u32 %v1436, 7
    %v1438 = vsub.s32 7, %v1437
    %v1439 = vrot.slane %v1314, %v1438
    %v1440 = vmul.f32 %v1430, %v1435
    %v1441 = vmul.f32 %v1430, %v1439
    %v1442 = vadd.f32 %v1378, %v1440
    %v1443 = vadd.f32 %v1379, %v1441
    %1444 = vrot.lane.b32.xlu0 %v333, 111
    %v1445 = vpop.permute.xlu0 %1444
    %1446 = vrot.lane.b32.xlu0 %v334, 111
    %v1447 = vpop.permute.xlu0 %1446
    %vm1448 = vcmp.lt.s32.totalorder %v340, 111
    %v1449 = vsel %vm1448, %v1445, %v1447
    %v1450 = vsel %vm1448, %v1447, %v1445
    %s1451 = scalar_lea.vmem %s11, 128
    %v1452 = vld [vmem:[%s1451] sm:$0xff]
    %v1453 = vld [vmem:[%s1451 + $0x8] sm:$0xff]
    %v1454 = vmul.f32 %v1449, %v1452
    %v1455 = vmul.f32 %v1450, %v1453
    %1457 = vset.pattern.permute.xlu0 0
    %1458 = vperm.xlu0 %1457, %v65
    %v1459 = vpop.permute.xlu0 %1458
    %v1461 = vlaneseq
    %v1462 = vshrl.u32 %v1461, 7
    %v1463 = vsub.s32 0, %v1462
    %v1464 = vrot.slane %v1454, %v1463
    %v1465 = vlaneseq
    %v1466 = vshrl.u32 %v1465, 7
    %v1467 = vsub.s32 0, %v1466
    %v1468 = vrot.slane %v1455, %v1467
    %v1469 = vmul.f32 %v1459, %v1464
    %v1470 = vmul.f32 %v1459, %v1468
    %v1471 = vadd.f32 %v1394, %v1469
    %v1472 = vadd.f32 %v1395, %v1470
    %1473 = vset.pattern.permute.xlu0 1
    %1474 = vperm.xlu0 %1473, %v65
    %v1475 = vpop.permute.xlu0 %1474
    %v1477 = vlaneseq
    %v1478 = vshrl.u32 %v1477, 7
    %v1479 = vsub.s32 1, %v1478
    %v1480 = vrot.slane %v1454, %v1479
    %v1481 = vlaneseq
    %v1482 = vshrl.u32 %v1481, 7
    %v1483 = vsub.s32 1, %v1482
    %v1484 = vrot.slane %v1455, %v1483
    %v1485 = vmul.f32 %v1475, %v1480
    %v1486 = vmul.f32 %v1475, %v1484
    %v1487 = vadd.f32 %v1410, %v1485
    %v1488 = vadd.f32 %v1411, %v1486
    %1489 = vset.pattern.permute.xlu0 2
    %1490 = vperm.xlu0 %1489, %v65
    %v1491 = vpop.permute.xlu0 %1490
    %v1493 = vlaneseq
    %v1494 = vshrl.u32 %v1493, 7
    %v1495 = vsub.s32 2, %v1494
    %v1496 = vrot.slane %v1454, %v1495
    %v1497 = vlaneseq
    %v1498 = vshrl.u32 %v1497, 7
    %v1499 = vsub.s32 2, %v1498
    %v1500 = vrot.slane %v1455, %v1499
    %v1501 = vmul.f32 %v1491, %v1496
    %v1502 = vmul.f32 %v1491, %v1500
    %v1503 = vadd.f32 %v1426, %v1501
    %v1504 = vadd.f32 %v1427, %v1502
    %1505 = vset.pattern.permute.xlu0 3
    %1506 = vperm.xlu0 %1505, %v65
    %v1507 = vpop.permute.xlu0 %1506
    %v1509 = vlaneseq
    %v1510 = vshrl.u32 %v1509, 7
    %v1511 = vsub.s32 3, %v1510
    %v1512 = vrot.slane %v1454, %v1511
    %v1513 = vlaneseq
    %v1514 = vshrl.u32 %v1513, 7
    %v1515 = vsub.s32 3, %v1514
    %v1516 = vrot.slane %v1455, %v1515
    %v1517 = vmul.f32 %v1507, %v1512
    %v1518 = vmul.f32 %v1507, %v1516
    %v1519 = vadd.f32 %v1442, %v1517
    %v1520 = vadd.f32 %v1443, %v1518
    %1521 = vset.pattern.permute.xlu0 4
    %1522 = vperm.xlu0 %1521, %v65
    %v1523 = vpop.permute.xlu0 %1522
    %v1525 = vlaneseq
    %v1526 = vshrl.u32 %v1525, 7
    %v1527 = vsub.s32 4, %v1526
    %v1528 = vrot.slane %v1454, %v1527
    %v1529 = vlaneseq
    %v1530 = vshrl.u32 %v1529, 7
    %v1531 = vsub.s32 4, %v1530
    %v1532 = vrot.slane %v1455, %v1531
    %v1533 = vmul.f32 %v1523, %v1528
    %v1534 = vmul.f32 %v1523, %v1532
    %v1535 = vadd.f32 %v1471, %v1533
    %v1536 = vadd.f32 %v1472, %v1534
    %1537 = vset.pattern.permute.xlu0 5
    %1538 = vperm.xlu0 %1537, %v65
    %v1539 = vpop.permute.xlu0 %1538
    %v1541 = vlaneseq
    %v1542 = vshrl.u32 %v1541, 7
    %v1543 = vsub.s32 5, %v1542
    %v1544 = vrot.slane %v1454, %v1543
    %v1545 = vlaneseq
    %v1546 = vshrl.u32 %v1545, 7
    %v1547 = vsub.s32 5, %v1546
    %v1548 = vrot.slane %v1455, %v1547
    %v1549 = vmul.f32 %v1539, %v1544
    %v1550 = vmul.f32 %v1539, %v1548
    %v1551 = vadd.f32 %v1487, %v1549
    %v1552 = vadd.f32 %v1488, %v1550
    %1553 = vset.pattern.permute.xlu0 6
    %1554 = vperm.xlu0 %1553, %v65
    %v1555 = vpop.permute.xlu0 %1554
    %v1557 = vlaneseq
    %v1558 = vshrl.u32 %v1557, 7
    %v1559 = vsub.s32 6, %v1558
    %v1560 = vrot.slane %v1454, %v1559
    %v1561 = vlaneseq
    %v1562 = vshrl.u32 %v1561, 7
    %v1563 = vsub.s32 6, %v1562
    %v1564 = vrot.slane %v1455, %v1563
    %v1565 = vmul.f32 %v1555, %v1560
    %v1566 = vmul.f32 %v1555, %v1564
    %v1567 = vadd.f32 %v1503, %v1565
    %v1568 = vadd.f32 %v1504, %v1566
    %1569 = vset.pattern.permute.xlu0 7
    %1570 = vperm.xlu0 %1569, %v65
    %v1571 = vpop.permute.xlu0 %1570
    %v1573 = vlaneseq
    %v1574 = vshrl.u32 %v1573, 7
    %v1575 = vsub.s32 7, %v1574
    %v1576 = vrot.slane %v1454, %v1575
    %v1577 = vlaneseq
    %v1578 = vshrl.u32 %v1577, 7
    %v1579 = vsub.s32 7, %v1578
    %v1580 = vrot.slane %v1455, %v1579
    %v1581 = vmul.f32 %v1571, %v1576
    %v1582 = vmul.f32 %v1571, %v1580
    %v1583 = vadd.f32 %v1519, %v1581
    %v1584 = vadd.f32 %v1520, %v1582
    %v1585 = vadd.f32 %v1535, %v1551
    %v1586 = vadd.f32 %v1536, %v1552
    %v1587 = vadd.f32 %v1567, %v1583
    %v1588 = vadd.f32 %v1568, %v1584
    %v1589 = vadd.f32 %v1585, %v1587
    %v1590 = vadd.f32 %v1586, %v1588
    %1592 = vset.pattern.permute.xlu0 0
    %1593 = vperm.xlu0 %1592, %v50
    %v1594 = vpop.permute.xlu0 %1593
    %v1596 = vmul.f32 %v1589, %v1594
    %v1597 = vmul.f32 %v1590, %v1594
    %1599 = vset.pattern.permute.xlu0 0
    %1600 = vperm.xlu0 %1599, %v51
    %v1601 = vpop.permute.xlu0 %1600
    %v1603 = vadd.f32 %v1596, %v1601
    %v1604 = vadd.f32 %v1597, %v1601
    %v1605 = vmax.f32 %v1603, 0.0
    %v1606 = vmax.f32 %v1604, 0.0
    %1607 = vst [vmem:[#allocation2] sm:$0xff] %v1605
    %1608 = vst [vmem:[#allocation2 + $0x8] sm:$0xff] %v1606
    // Predicated region
    $region50: #{tpu_custom_call.1} parent=1 // pred_check
      _
    $region51: #{tpu_custom_call.1} parent=1 // pred_check_branch
      %1610 = sbr.rel (0) target = $region53
    $region52: #{tpu_custom_call.1} parent=1 // pred_region
      %s1612 = ssub.s32 256, 256
      %1613 = vsyncadd [#allocation3], %s1612
      %s1615 = sshll.u32 [#allocation2], 4
      %s1616 = int_to_ptr.vmem [resolvable:$true] %s1615
      %1618 = dma.vmem_to_hbm [thread:$0]  %s1616, 256, %s12, [#allocation3]
    $region53: #{tpu_custom_call.1} parent=1 // pred_fallthru
      _
    // Predicated region
    $region54: #{tpu_custom_call.1} parent=1 // pred_check
      _
    $region55: #{tpu_custom_call.1} parent=1 // pred_check_branch
      %1620 = sbr.rel (0) target = $region57
    $region56: #{tpu_custom_call.1} parent=1 // pred_region
      _
    $region57: #{tpu_custom_call.1} parent=1 // pred_fallthru
      _
    // Predicated region
    $region58: #{tpu_custom_call.1} parent=1 // pred_check
      _
    $region59: #{tpu_custom_call.1} parent=1 // pred_check_branch
      %1622 = sbr.rel (0) target = $region61
    $region60: #{tpu_custom_call.1} parent=1 // pred_region
      %1623 = dma.done [#allocation3], 256
    $region61: #{tpu_custom_call.1} parent=1 // pred_fallthru
      _
    // Predicated region
    $region62: #{tpu_custom_call.1} parent=1 // pred_check
      _
    $region63: #{tpu_custom_call.1} parent=1 // pred_check_branch
      %1625 = sbr.rel (0) target = $region65
    $region64: #{tpu_custom_call.1} parent=1 // pred_region
      _
    $region65: #{tpu_custom_call.1} parent=1 // pred_fallthru
      _
    %1626 = vsyncpa [#allocation3], 1

</llo_original>
